<compile_context>
chip_gen: v7x
topology: tpu7x:2x2x1
jax: 0.10.0
libtpu: 0.0.40
codegen_flags: <defaults>
</compile_context>

<pallas_src>
import functools

import jax
import jax.numpy as jnp
from jax import lax
from jax.experimental import pallas as pl
from jax.experimental.pallas import tpu as pltpu

NEG_SLOPE = 0.1
GN_EPS = 1e-5
HIGH = lax.Precision.HIGHEST  # for the pure-JAX reference only


def _leaky(x, slope=NEG_SLOPE):
    return jnp.where(x >= 0.0, x, slope * x)


def _compiler_params():
    return pltpu.CompilerParams(
        dimension_semantics=("parallel",),
        vmem_limit_bytes=32 * 1024 * 1024,
    )


def _group_onehot(c, g):
    gid = jnp.arange(c) // (c // g)
    return (gid[:, None] == jnp.arange(g)[None, :]).astype(jnp.float32)  # (C, G)


def _partial_group_stats(y, gsum):
    """Per-tile partial GroupNorm sums. y: (T, C), gsum: (C, G) -> (1, 1, 2G)."""
    s1 = jnp.sum(jnp.dot(y, gsum, preferred_element_type=jnp.float32),
                 axis=0, keepdims=True)                       # (1, G)
    s2 = jnp.sum(jnp.dot(y * y, gsum, preferred_element_type=jnp.float32),
                 axis=0, keepdims=True)                       # (1, G)
    return jnp.concatenate([s1, s2], axis=-1)[None]           # (1, 1, 2G)


def _gn_scale_shift(stats, gamma, beta, n_rows, num_groups):
    """Reduce per-tile partial stats -> per-channel affine (scale, shift)."""
    c = gamma.shape[1]
    g = num_groups
    s = jnp.sum(stats[:, 0, :], axis=0)                       # (2G,)
    s1, s2 = s[:g], s[g:]
    cnt = float(n_rows * (c // g))
    mean = s1 / cnt
    var = jnp.maximum(s2 / cnt - mean * mean, 0.0)            # biased var (torch)
    inv = lax.rsqrt(var + GN_EPS)                             # (G,)
    gid = jnp.arange(c) // (c // g)
    scale_c = gamma * inv[gid][None, :]                       # (1, C)
    shift_c = beta - mean[gid][None, :] * scale_c             # (1, C)
    return scale_c, shift_c


# ----------------------------- Pallas kernels -----------------------------

def unary1_shortcut_kernel(x_ref, w1_ref, b1_ref, ws_ref, bs_ref,
                           g1_ref, gs_ref,
                           y1_ref, ys_ref, st1_ref, sts_ref):
    # Fused unary1 + unary_shortcut matmuls: read s_feats once, two outputs,
    # plus per-tile partial GroupNorm statistics for each.
    x = x_ref[...]
    y1 = jnp.dot(x, w1_ref[...], preferred_element_type=jnp.float32) + b1_ref[...]
    ys = jnp.dot(x, ws_ref[...], preferred_element_type=jnp.float32) + bs_ref[...]
    y1_ref[...] = y1
    ys_ref[...] = ys
    st1_ref[...] = _partial_group_stats(y1, g1_ref[...])
    sts_ref[...] = _partial_group_stats(ys, gs_ref[...])


def kpconv_kernel(sqd_ref, nf_ref, mask_ref, sc1_ref, sh1_ref,
                  wf_ref, b_ref, gsum_ref,
                  o_ref, st_ref, *, sigma, n_kpts):
    # Prologue: apply unary1's GroupNorm affine + LeakyReLU to the gathered raw
    # features, and zero padded-neighbor rows via the index mask.
    nf = nf_ref[...]                                         # (T, H, C)
    sc1 = sc1_ref[...][None]                                 # (1, 1, C)
    sh1 = sh1_ref[...][None]
    mask = mask_ref[...]                                     # (T, H)
    nfn = _leaky(nf * sc1 + sh1) * mask[..., None]           # (T, H, C)

    # Kernel-point correlation weights.
    nw = jnp.maximum(1.0 - jnp.sqrt(sqd_ref[...]) / sigma, 0.0)   # (T, K, H)

    # Correlation on the VPU (broadcast multiply + sublane reduce), directly in
    # the flattened (T, K*C) layout, then ONE MXU matmul with w reshaped to
    # (K*C, D) instead of K tiny per-kernel-point matmuls.
    pieces = []
    for k in range(n_kpts):
        wk = nw[:, k, :]                                     # (T, H)
        pieces.append(jnp.sum(wk[..., None] * nfn, axis=1))  # (T, C)
    weighted = jnp.concatenate(pieces, axis=-1)              # (T, K*C)
    out = jnp.dot(weighted, wf_ref[...],
                  preferred_element_type=jnp.float32)        # (T, D)

    # Neighbor-count normalization (same criterion as the PyTorch KPConv).
    feat_sum = jnp.sum(nfn, axis=-1)                         # (T, H)
    num = jnp.maximum(jnp.sum((feat_sum > 0.0).astype(jnp.float32),
                              axis=-1, keepdims=True), 1.0)
    out = out / num + b_ref[...]

    o_ref[...] = out
    st_ref[...] = _partial_group_stats(out, gsum_ref[...])


def unary2_kernel(x_ref, sc_ref, sh_ref, w_ref, b_ref, gsum_ref,
                  y_ref, st_ref):
    # Prologue fuses the ConvBlock's GroupNorm affine + LeakyReLU.
    x = _leaky(x_ref[...] * sc_ref[...] + sh_ref[...])
    y = jnp.dot(x, w_ref[...], preferred_element_type=jnp.float32) + b_ref[...]
    y_ref[...] = y
    st_ref[...] = _partial_group_stats(y, gsum_ref[...])


def final_kernel(y2_ref, ys_ref, sc2_ref, sh2_ref, scs_ref, shs_ref, o_ref):
    # Fused epilogue: GN affines for unary2 and the shortcut + residual add +
    # LeakyReLU (no standalone add kernel).
    a = y2_ref[...] * sc2_ref[...] + sh2_ref[...]
    b = ys_ref[...] * scs_ref[...] + shs_ref[...]
    o_ref[...] = _leaky(a + b)


# ----------------------------- wrappers (glue) -----------------------------

def _choose_tile(n, cap=256):
    for t in (cap, 128, 64, 32, 16, 8):
        if t <= cap and n % t == 0:
            return t
    return n


def _conv_prepare(y1_raw, q_points, s_points, neighbor_indices, kernel_points):
    # TODO(synk): neighbor gather and 3-D distance math kept in plain JAX.
    n_s = s_points.shape[0]
    inf = 1e6
    sp_pad = jnp.concatenate(
        [s_points, jnp.full((1, 3), inf, dtype=s_points.dtype)], axis=0)
    f_pad = jnp.concatenate(
        [y1_raw, jnp.zeros((1, y1_raw.shape[1]), dtype=y1_raw.dtype)], axis=0)
    neighbors = sp_pad[neighbor_indices]                      # (M, H, 3)
    rel = neighbors - q_points[:, None, :]                    # (M, H, 3)
    diff = kernel_points[None, :, None, :] - rel[:, None, :, :]   # (M, K, H, 3)
    sqd = jnp.sum(diff * diff, axis=-1)                       # (M, K, H) directly
    nf_raw = f_pad[neighbor_indices]                          # (M, H, C) raw (pre-GN)
    mask = (neighbor_indices < n_s).astype(jnp.float32)       # (M, H)
    return sqd, nf_raw, mask


def residual_block_forward(params, s_feats, q_points, s_points, neighbor_indices,
                           num_groups, sigma, strided=False, tile_m=None):
    if strided:
        # TODO(synk): strided maxpool shortcut not implemented.
        raise NotImplementedError("strided ResidualBlock not implemented")

    n, cin = s_feats.shape
    mid = params['unary1']['w'].shape[1]
    cout = params['unary_shortcut']['w'].shape[1]
    g = num_groups
    h = neighbor_indices.shape[1]
    k_pts = params['conv']['kernel_points'].shape[0]
    d = params['conv']['w'].shape[-1]

    if tile_m is None:
        tile_m = _choose_tile(n)
    assert n % tile_m == 0, "demo requires n_points % tile_m == 0"
    grid_m = n // tile_m

    g1 = _group_onehot(mid, g)
    gs = _group_onehot(cout, g)
    gc = _group_onehot(d, g)
    g2 = _group_onehot(cout, g)

    stats_shape = jax.ShapeDtypeStruct((grid_m, 1, 2 * g), jnp.float32)
    stats_spec = pl.BlockSpec((1, 1, 2 * g), lambda i: (i, 0, 0))

    # ---- kernel 1: fused unary1 + unary_shortcut matmuls + partial GN stats --
    y1, ys, st1, sts = pl.pallas_call(
        unary1_shortcut_kernel,
        out_shape=(jax.ShapeDtypeStruct((n, mid), jnp.float32),
                   jax.ShapeDtypeStruct((n, cout), jnp.float32),
                   stats_shape, stats_shape),
        grid=(grid_m,),
        in_specs=[
            pl.BlockSpec((tile_m, cin), lambda i: (i, 0)),
            pl.BlockSpec((cin, mid), lambda i: (0, 0)),
            pl.BlockSpec((1, mid), lambda i: (0, 0)),
            pl.BlockSpec((cin, cout), lambda i: (0, 0)),
            pl.BlockSpec((1, cout), lambda i: (0, 0)),
            pl.BlockSpec((mid, g), lambda i: (0, 0)),
            pl.BlockSpec((cout, g), lambda i: (0, 0)),
        ],
        out_specs=(
            pl.BlockSpec((tile_m, mid), lambda i: (i, 0)),
            pl.BlockSpec((tile_m, cout), lambda i: (i, 0)),
            stats_spec, stats_spec,
        ),
        compiler_params=_compiler_params(),
    )(s_feats, params['unary1']['w'], params['unary1']['b'],
      params['unary_shortcut']['w'], params['unary_shortcut']['b'], g1, gs)

    scale1, shift1 = _gn_scale_shift(st1, params['unary1']['gamma'],
                                     params['unary1']['beta'], n, g)
    scales, shifts = _gn_scale_shift(sts, params['unary_shortcut']['gamma'],
                                     params['unary_shortcut']['beta'], n, g)

    # ---- kernel 2: KPConv (GN+lrelu of unary1 fused into prologue) ----------
    sqd, nf_raw, mask = _conv_prepare(y1, q_points, s_points, neighbor_indices,
                                      params['conv']['kernel_points'])
    w_flat = params['conv']['w'].reshape(k_pts * mid, d)

    conv_raw, stc = pl.pallas_call(
        functools.partial(kpconv_kernel, sigma=sigma, n_kpts=k_pts),
        out_shape=(jax.ShapeDtypeStruct((n, d), jnp.float32), stats_shape),
        grid=(grid_m,),
        in_specs=[
            pl.BlockSpec((tile_m, k_pts, h), lambda i: (i, 0, 0)),
            pl.BlockSpec((tile_m, h, mid), lambda i: (i, 0, 0)),
            pl.BlockSpec((tile_m, h), lambda i: (i, 0)),
            pl.BlockSpec((1, mid), lambda i: (0, 0)),
            pl.BlockSpec((1, mid), lambda i: (0, 0)),
            pl.BlockSpec((k_pts * mid, d), lambda i: (0, 0)),
            pl.BlockSpec((1, d), lambda i: (0, 0)),
            pl.BlockSpec((d, g), lambda i: (0, 0)),
        ],
        out_specs=(pl.BlockSpec((tile_m, d), lambda i: (i, 0)), stats_spec),
        compiler_params=_compiler_params(),
    )(sqd, nf_raw, mask, scale1, shift1, w_flat, params['conv']['b'], gc)

    scale_c, shift_c = _gn_scale_shift(stc, params['conv']['gamma'],
                                       params['conv']['beta'], n, g)

    # ---- kernel 3: unary2 matmul (conv GN+lrelu fused into prologue) --------
    y2, st2 = pl.pallas_call(
        unary2_kernel,
        out_shape=(jax.ShapeDtypeStruct((n, cout), jnp.float32), stats_shape),
        grid=(grid_m,),
        in_specs=[
            pl.BlockSpec((tile_m, d), lambda i: (i, 0)),
            pl.BlockSpec((1, d), lambda i: (0, 0)),
            pl.BlockSpec((1, d), lambda i: (0, 0)),
            pl.BlockSpec((d, cout), lambda i: (0, 0)),
            pl.BlockSpec((1, cout), lambda i: (0, 0)),
            pl.BlockSpec((cout, g), lambda i: (0, 0)),
        ],
        out_specs=(pl.BlockSpec((tile_m, cout), lambda i: (i, 0)), stats_spec),
        compiler_params=_compiler_params(),
    )(conv_raw, scale_c, shift_c, params['unary2']['w'], params['unary2']['b'], g2)

    scale2, shift2 = _gn_scale_shift(st2, params['unary2']['gamma'],
                                     params['unary2']['beta'], n, g)

    # ---- kernel 4: fused GN affines + residual add + LeakyReLU --------------
    out = pl.pallas_call(
        final_kernel,
        out_shape=jax.ShapeDtypeStruct((n, cout), jnp.float32),
        grid=(grid_m,),
        in_specs=[
            pl.BlockSpec((tile_m, cout), lambda i: (i, 0)),
            pl.BlockSpec((tile_m, cout), lambda i: (i, 0)),
            pl.BlockSpec((1, cout), lambda i: (0, 0)),
            pl.BlockSpec((1, cout), lambda i: (0, 0)),
            pl.BlockSpec((1, cout), lambda i: (0, 0)),
            pl.BlockSpec((1, cout), lambda i: (0, 0)),
        ],
        out_specs=pl.BlockSpec((tile_m, cout), lambda i: (i, 0)),
        compiler_params=_compiler_params(),
    )(y2, ys, scale2, shift2, scales, shifts)
    return out


# ----------------------------- parameters -----------------------------

def init_params(key, in_channels, out_channels, kernel_size):
    mid = out_channels // 4
    keys = jax.random.split(key, 9)

    def lin(kw, kb, cin, cout):
        return {
            'w': jax.random.normal(kw, (cin, cout), jnp.float32) / jnp.sqrt(float(cin)),
            'b': jax.random.normal(kb, (1, cout), jnp.float32) * 0.1,
            'gamma': jnp.ones((1, cout), jnp.float32),
            'beta': jnp.zeros((1, cout), jnp.float32),
        }

    return {
        'unary1': lin(keys[0], keys[1], in_channels, mid),
        'unary2': lin(keys[2], keys[3], mid, out_channels),
        'unary_shortcut': lin(keys[4], keys[5], in_channels, out_channels),
        'conv': {
            'w': jax.random.normal(keys[6], (kernel_size, mid, mid), jnp.float32)
                 / jnp.sqrt(float(kernel_size * mid)),
            'b': jax.random.normal(keys[7], (1, mid), jnp.float32) * 0.1,
            # synthetic deterministic kernel-point disposition (not loaded from disk)
            'kernel_points': jax.random.normal(keys[8], (kernel_size, 3), jnp.float32) * 0.6,
            'gamma': jnp.ones((1, mid), jnp.float32),
            'beta': jnp.zeros((1, mid), jnp.float32),
        },
    }


# ----------------------------- pure-JAX reference -----------------------------

def _ref_group_norm(x, num_groups, gamma, beta, eps=GN_EPS):
    n, c = x.shape
    g = num_groups
    xg = x.T.reshape(g, (c // g) * n)
    mean = xg.mean(axis=1, keepdims=True)
    var = ((xg - mean) ** 2).mean(axis=1, keepdims=True)
    xn = ((xg - mean) / jnp.sqrt(var + eps)).reshape(c, n).T
    return xn * gamma + beta


def _ref_unary(x, p, num_groups, include_relu):
    y = jnp.dot(x, p['w'], precision=HIGH) + p['b']
    y = _ref_group_norm(y, num_groups, p['gamma'], p['beta'])
    return _leaky(y) if include_relu else y


def _ref_kpconv(x, q_points, s_points, nbr, p, sigma):
    inf = 1e6
    sp = jnp.concatenate([s_points, jnp.full((1, 3), inf, jnp.float32)], axis=0)
    sf = jnp.concatenate([x, jnp.zeros((1, x.shape[1]), jnp.float32)], axis=0)
    neighbors = sp[nbr] - q_points[:, None, :]
    diff = neighbors[:, :, None, :] - p['kernel_points'][None, None, :, :]
    sqd = jnp.sum(diff * diff, axis=-1)                                    # (M, H, K)
    nw = jnp.maximum(1.0 - jnp.sqrt(sqd) / sigma, 0.0)
    nw = jnp.swapaxes(nw, 1, 2)                                            # (M, K, H)
    nf = sf[nbr]                                                           # (M, H, C)
    weighted = jnp.matmul(nw, nf, precision=HIGH)                          # (M, K, C)
    out = jnp.einsum('nkc,kcd->nd', weighted, p['w'], precision=HIGH)
    num = jnp.maximum(
        jnp.sum((jnp.sum(nf, axis=-1) > 0.0).astype(jnp.float32),
                axis=-1, keepdims=True), 1.0)
    return out / num + p['b']


def _ref_forward(params, s_feats, q_points, s_points, nbr, num_groups, sigma):
    x = _ref_unary(s_feats, params['unary1'], num_groups, True)
    x = _ref_kpconv(x, q_points, s_points, nbr, params['conv'], sigma)
    x = _ref_group_norm(x, num_groups, params['conv']['gamma'], params['conv']['beta'])
    x = _leaky(x)
    x = _ref_unary(x, params['unary2'], num_groups, False)
    sc = _ref_unary(s_feats, params['unary_shortcut'], num_groups, False)
    return _leaky(x + sc)


# ----------------------------- main -----------------------------

if __name__ == "__main__":
    in_channels = 16
    out_channels = 32
    kernel_size = 5
    radius = 2.5
    sigma = 2.0
    num_groups = 4

    n_points = 128     # non-strided: query points == support points
    n_neighbors = 8
    tile_m = 32        # -> grid of 4 row tiles, "parallel" over the point axis

    key = jax.random.PRNGKey(0)
    k_par, k_pts, k_feat, k_nbr = jax.random.split(key, 4)

    params = init_params(k_par, in_channels, out_channels, kernel_size)

    s_points = jax.random.uniform(k_pts, (n_points, 3), jnp.float32) * 2.0
    q_points = s_points
    s_feats = jax.random.normal(k_feat, (n_points, in_channels), jnp.float32)
    # index == n_points means "padded / no neighbor" (maps to the appended zero row)
    neighbor_indices = jax.random.randint(
        k_nbr, (n_points, n_neighbors), 0, n_points + 1, dtype=jnp.int32)

    out = residual_block_forward(params, s_feats, q_points, s_points,
                                 neighbor_indices, num_groups, sigma,
                                 strided=False, tile_m=tile_m)
    out = jax.block_until_ready(out)

    ref = _ref_forward(params, s_feats, q_points, s_points, neighbor_indices,
                       num_groups, sigma)

    assert out.shape == (n_points, out_channels)
    assert bool(jnp.all(jnp.isfinite(out)))
    assert bool(jnp.allclose(out, ref, rtol=2e-3, atol=2e-3)), \
        f"max abs diff = {float(jnp.max(jnp.abs(out - ref)))}"

    print("KERNEL_OK")
</pallas_src>

<mosaic_0001>
module attributes {stable_mosaic.version = 11 : i64} {
  func.func @unary1_shortcut_kernel(%arg0: i32, %arg1: memref<32x16xf32, #tpu.memory_space<vmem>>, %arg2: memref<16x8xf32, #tpu.memory_space<vmem>>, %arg3: memref<1x8xf32, #tpu.memory_space<vmem>>, %arg4: memref<16x32xf32, #tpu.memory_space<vmem>>, %arg5: memref<1x32xf32, #tpu.memory_space<vmem>>, %arg6: memref<8x4xf32, #tpu.memory_space<vmem>>, %arg7: memref<32x4xf32, #tpu.memory_space<vmem>>, %arg8: memref<32x8xf32, #tpu.memory_space<vmem>>, %arg9: memref<32x32xf32, #tpu.memory_space<vmem>>, %arg10: memref<1x1x8xf32, #tpu.memory_space<vmem>>, %arg11: memref<1x1x8xf32, #tpu.memory_space<vmem>>) attributes {dimension_semantics = [#tpu.dimension_semantics<parallel>], iteration_bounds = array<i64: 4>, scalar_prefetch = 0 : i64, scratch_operands = 0 : i64, tpu.core_type = #tpu.core_type<tc>, window_params = [{transform_indices = @transform_0, window_bounds = array<i64: 32, 16>}, {pipeline_mode = #tpu.pipeline_mode<synchronous>, transform_indices = @transform_1, window_bounds = array<i64: 16, 8>}, {pipeline_mode = #tpu.pipeline_mode<synchronous>, transform_indices = @transform_2, window_bounds = array<i64: 1, 8>}, {pipeline_mode = #tpu.pipeline_mode<synchronous>, transform_indices = @transform_3, window_bounds = array<i64: 16, 32>}, {pipeline_mode = #tpu.pipeline_mode<synchronous>, transform_indices = @transform_4, window_bounds = array<i64: 1, 32>}, {pipeline_mode = #tpu.pipeline_mode<synchronous>, transform_indices = @transform_5, window_bounds = array<i64: 8, 4>}, {pipeline_mode = #tpu.pipeline_mode<synchronous>, transform_indices = @transform_6, window_bounds = array<i64: 32, 4>}, {transform_indices = @transform_7, window_bounds = array<i64: 32, 8>}, {transform_indices = @transform_8, window_bounds = array<i64: 32, 32>}, {transform_indices = @transform_9, window_bounds = array<i64: 1, 1, 8>}, {transform_indices = @transform_10, window_bounds = array<i64: 1, 1, 8>}]} {
    %c0 = arith.constant 0 : index
    %c0_0 = arith.constant 0 : index
    %0 = vector.load %arg1[%c0, %c0_0] : memref<32x16xf32, #tpu.memory_space<vmem>>, vector<32x16xf32>
    %c0_1 = arith.constant 0 : index
    %c0_2 = arith.constant 0 : index
    %1 = vector.load %arg2[%c0_1, %c0_2] : memref<16x8xf32, #tpu.memory_space<vmem>>, vector<16x8xf32>
    %cst = arith.constant dense<0.000000e+00> : vector<32x8xf32>
    %2 = tpu.matmul %0, %1, %cst {dimension_numbers = #tpu.dot_dimension_numbers<[1], [0], [0], [1], [0, 0, 1, 1], [], []>} : vector<32x16xf32>, vector<16x8xf32>, vector<32x8xf32> -> vector<32x8xf32>
    %c0_3 = arith.constant 0 : index
    %c0_4 = arith.constant 0 : index
    %3 = vector.load %arg3[%c0_3, %c0_4] : memref<1x8xf32, #tpu.memory_space<vmem>>, vector<1x8xf32>
    %4 = vector.broadcast %3 : vector<1x8xf32> to vector<32x8xf32>
    %5 = arith.addf %2, %4 : vector<32x8xf32>
    %c0_5 = arith.constant 0 : index
    %c0_6 = arith.constant 0 : index
    %6 = vector.load %arg4[%c0_5, %c0_6] : memref<16x32xf32, #tpu.memory_space<vmem>>, vector<16x32xf32>
    %cst_7 = arith.constant dense<0.000000e+00> : vector<32x32xf32>
    %7 = tpu.matmul %0, %6, %cst_7 {dimension_numbers = #tpu.dot_dimension_numbers<[1], [0], [0], [1], [0, 0, 1, 1], [], []>} : vector<32x16xf32>, vector<16x32xf32>, vector<32x32xf32> -> vector<32x32xf32>
    %c0_8 = arith.constant 0 : index
    %c0_9 = arith.constant 0 : index
    %8 = vector.load %arg5[%c0_8, %c0_9] : memref<1x32xf32, #tpu.memory_space<vmem>>, vector<1x32xf32>
    %9 = vector.broadcast %8 : vector<1x32xf32> to vector<32x32xf32>
    %10 = arith.addf %7, %9 : vector<32x32xf32>
    %c0_10 = arith.constant 0 : index
    %c0_11 = arith.constant 0 : index
    %11 = vector.load %arg8[%c0_10, %c0_11] : memref<32x8xf32, #tpu.memory_space<vmem>>, vector<32x8xf32>
    tpu.vector_store %arg8[%c0_10, %c0_11], %5 {strides = array<i32>} : memref<32x8xf32, #tpu.memory_space<vmem>>, vector<32x8xf32>,
    %c0_12 = arith.constant 0 : index
    %c0_13 = arith.constant 0 : index
    %12 = vector.load %arg9[%c0_12, %c0_13] : memref<32x32xf32, #tpu.memory_space<vmem>>, vector<32x32xf32>
    tpu.vector_store %arg9[%c0_12, %c0_13], %10 {strides = array<i32>} : memref<32x32xf32, #tpu.memory_space<vmem>>, vector<32x32xf32>,
    %c0_14 = arith.constant 0 : index
    %c0_15 = arith.constant 0 : index
    %13 = vector.load %arg6[%c0_14, %c0_15] : memref<8x4xf32, #tpu.memory_space<vmem>>, vector<8x4xf32>
    %cst_16 = arith.constant dense<0.000000e+00> : vector<32x4xf32>
    %14 = tpu.matmul %5, %13, %cst_16 {dimension_numbers = #tpu.dot_dimension_numbers<[1], [0], [0], [1], [0, 0, 1, 1], [], []>} : vector<32x8xf32>, vector<8x4xf32>, vector<32x4xf32> -> vector<32x4xf32>
    %cst_17 = arith.constant dense<0.000000e+00> : vector<4xf32>
    %15 = vector.multi_reduction <add>, %14, %cst_17 [0] : vector<32x4xf32> to vector<4xf32>
    %16 = vector.shape_cast %15 : vector<4xf32> to vector<1x4xf32>
    %17 = arith.mulf %5, %5 : vector<32x8xf32>
    %cst_18 = arith.constant dense<0.000000e+00> : vector<32x4xf32>
    %18 = tpu.matmul %17, %13, %cst_18 {dimension_numbers = #tpu.dot_dimension_numbers<[1], [0], [0], [1], [0, 0, 1, 1], [], []>} : vector<32x8xf32>, vector<8x4xf32>, vector<32x4xf32> -> vector<32x4xf32>
    %cst_19 = arith.constant dense<0.000000e+00> : vector<4xf32>
    %19 = vector.multi_reduction <add>, %18, %cst_19 [0] : vector<32x4xf32> to vector<4xf32>
    %20 = vector.shape_cast %19 : vector<4xf32> to vector<1x4xf32>
    %21 = tpu.concatenate %16, %20 in 1 : vector<1x4xf32>, vector<1x4xf32> -> vector<1x8xf32>
    %22 = vector.shape_cast %21 : vector<1x8xf32> to vector<1x1x8xf32>
    %c0_20 = arith.constant 0 : index
    %c0_21 = arith.constant 0 : index
    %c0_22 = arith.constant 0 : index
    %23 = vector.load %arg10[%c0_20, %c0_21, %c0_22] : memref<1x1x8xf32, #tpu.memory_space<vmem>>, vector<1x1x8xf32>
    tpu.vector_store %arg10[%c0_20, %c0_21, %c0_22], %22 {strides = array<i32>} : memref<1x1x8xf32, #tpu.memory_space<vmem>>, vector<1x1x8xf32>,
    %c0_23 = arith.constant 0 : index
    %c0_24 = arith.constant 0 : index
    %24 = vector.load %arg7[%c0_23, %c0_24] : memref<32x4xf32, #tpu.memory_space<vmem>>, vector<32x4xf32>
    %cst_25 = arith.constant dense<0.000000e+00> : vector<32x4xf32>
    %25 = tpu.matmul %10, %24, %cst_25 {dimension_numbers = #tpu.dot_dimension_numbers<[1], [0], [0], [1], [0, 0, 1, 1], [], []>} : vector<32x32xf32>, vector<32x4xf32>, vector<32x4xf32> -> vector<32x4xf32>
    %cst_26 = arith.constant dense<0.000000e+00> : vector<4xf32>
    %26 = vector.multi_reduction <add>, %25, %cst_26 [0] : vector<32x4xf32> to vector<4xf32>
    %27 = vector.shape_cast %26 : vector<4xf32> to vector<1x4xf32>
    %28 = arith.mulf %10, %10 : vector<32x32xf32>
    %cst_27 = arith.constant dense<0.000000e+00> : vector<32x4xf32>
    %29 = tpu.matmul %28, %24, %cst_27 {dimension_numbers = #tpu.dot_dimension_numbers<[1], [0], [0], [1], [0, 0, 1, 1], [], []>} : vector<32x32xf32>, vector<32x4xf32>, vector<32x4xf32> -> vector<32x4xf32>
    %cst_28 = arith.constant dense<0.000000e+00> : vector<4xf32>
    %30 = vector.multi_reduction <add>, %29, %cst_28 [0] : vector<32x4xf32> to vector<4xf32>
    %31 = vector.shape_cast %30 : vector<4xf32> to vector<1x4xf32>
    %32 = tpu.concatenate %27, %31 in 1 : vector<1x4xf32>, vector<1x4xf32> -> vector<1x8xf32>
    %33 = vector.shape_cast %32 : vector<1x8xf32> to vector<1x1x8xf32>
    %c0_29 = arith.constant 0 : index
    %c0_30 = arith.constant 0 : index
    %c0_31 = arith.constant 0 : index
    %34 = vector.load %arg11[%c0_29, %c0_30, %c0_31] : memref<1x1x8xf32, #tpu.memory_space<vmem>>, vector<1x1x8xf32>
    tpu.vector_store %arg11[%c0_29, %c0_30, %c0_31], %33 {strides = array<i32>} : memref<1x1x8xf32, #tpu.memory_space<vmem>>, vector<1x1x8xf32>,
    return
  }
  func.func @transform_0(%arg0: i32) -> (i32, i32) {
    %c0_i32 = arith.constant 0 : i32
    %c0_i32_0 = arith.constant 0 : i32
    return %arg0, %c0_i32 : i32, i32
  }
  func.func @transform_1(%arg0: i32) -> (i32, i32) {
    %c0_i32 = arith.constant 0 : i32
    %c0_i32_0 = arith.constant 0 : i32
    %c0_i32_1 = arith.constant 0 : i32
    return %c0_i32, %c0_i32_0 : i32, i32
  }
  func.func @transform_2(%arg0: i32) -> (i32, i32) {
    %c0_i32 = arith.constant 0 : i32
    %c0_i32_0 = arith.constant 0 : i32
    %c0_i32_1 = arith.constant 0 : i32
    return %c0_i32, %c0_i32_0 : i32, i32
  }
  func.func @transform_3(%arg0: i32) -> (i32, i32) {
    %c0_i32 = arith.constant 0 : i32
    %c0_i32_0 = arith.constant 0 : i32
    %c0_i32_1 = arith.constant 0 : i32
    return %c0_i32, %c0_i32_0 : i32, i32
  }
  func.func @transform_4(%arg0: i32) -> (i32, i32) {
    %c0_i32 = arith.constant 0 : i32
    %c0_i32_0 = arith.constant 0 : i32
    %c0_i32_1 = arith.constant 0 : i32
    return %c0_i32, %c0_i32_0 : i32, i32
  }
  func.func @transform_5(%arg0: i32) -> (i32, i32) {
    %c0_i32 = arith.constant 0 : i32
    %c0_i32_0 = arith.constant 0 : i32
    %c0_i32_1 = arith.constant 0 : i32
    return %c0_i32, %c0_i32_0 : i32, i32
  }
  func.func @transform_6(%arg0: i32) -> (i32, i32) {
    %c0_i32 = arith.constant 0 : i32
    %c0_i32_0 = arith.constant 0 : i32
    %c0_i32_1 = arith.constant 0 : i32
    return %c0_i32, %c0_i32_0 : i32, i32
  }
  func.func @transform_7(%arg0: i32) -> (i32, i32) {
    %c0_i32 = arith.constant 0 : i32
    %c0_i32_0 = arith.constant 0 : i32
    return %arg0, %c0_i32 : i32, i32
  }
  func.func @transform_8(%arg0: i32) -> (i32, i32) {
    %c0_i32 = arith.constant 0 : i32
    %c0_i32_0 = arith.constant 0 : i32
    return %arg0, %c0_i32 : i32, i32
  }
  func.func @transform_9(%arg0: i32) -> (i32, i32, i32) {
    %c0_i32 = arith.constant 0 : i32
    %c0_i32_0 = arith.constant 0 : i32
    %c0_i32_1 = arith.constant 0 : i32
    return %arg0, %c0_i32, %c0_i32_0 : i32, i32, i32
  }
  func.func @transform_10(%arg0: i32) -> (i32, i32, i32) {
    %c0_i32 = arith.constant 0 : i32
    %c0_i32_0 = arith.constant 0 : i32
    %c0_i32_1 = arith.constant 0 : i32
    return %arg0, %c0_i32, %c0_i32_0 : i32, i32, i32
  }
}

</mosaic_0001>

<llo_original>
// kernel: tpu_custom_call.1
$region0: #{tpu_custom_call.1}
  #allocation0 [shape = 'u32[]', space=smem, size = 0x4, offset = 0x4, fixed_abs, tag = 'smem constant byte address 0x4 - core index']
  #allocation1 [shape = 'u32[144,128]{1,0:T(1,128)}', space=vmem, size = 0x12000, scoped, tag = 'internal scratch']
  %s0 = inlined_call_operand.vmem [shape: f32[128,16], index: 0, kind: input, shape index: {}]
  %s1 = inlined_call_operand.vmem [shape: f32[16,8], index: 1, kind: input, shape index: {}]
  %s2 = inlined_call_operand.vmem [shape: f32[1,8], index: 2, kind: input, shape index: {}]
  %s3 = inlined_call_operand.vmem [shape: f32[16,32], index: 3, kind: input, shape index: {}]
  %s4 = inlined_call_operand.vmem [shape: f32[1,32], index: 4, kind: input, shape index: {}]
  %s5 = inlined_call_operand.vmem [shape: f32[8,4], index: 5, kind: input, shape index: {}]
  %s6 = inlined_call_operand.vmem [shape: f32[32,4], index: 6, kind: input, shape index: {}]
  %s7 = inlined_call_operand.vmem [shape: f32[128,8], index: 7, kind: output, shape index: {0}]
  %s8 = inlined_call_operand.vmem [shape: f32[128,32], index: 8, kind: output, shape index: {1}]
  %s9 = inlined_call_operand.hbm [shape: f32[4,1,8], index: 9, kind: output, shape index: {2}]
  %s10 = inlined_call_operand.hbm [shape: f32[4,1,8], index: 10, kind: output, shape index: {3}]
  %11 = xla_tuple %s7, %s8, %s9, %s10
  %s12 = sld [smem:[#allocation0]]
  $region85: #{tpu_custom_call.1} parent=0
    _
  %s14 = ssub.s32 1, %s12
  %s15 = scalar_select 0, %s14, %s12
  $region1: #{tpu_custom_call.1} parent=0
    #allocation2 [shape = 'u8[1024]{0}', space=vmem, size = 0x400, scoped, tag = 'output window, operand 2']
    #allocation3 [shape = 's32[2]{0}', space=sflag, size = 0x8, scoped, tag = 'scoped memory for tpu_custom_call.1']
    #allocation4 [shape = 'u8[1024]{0}', space=vmem, size = 0x400, scoped, tag = 'output window, operand 3']
    #allocation5 [shape = 's32[2]{0}', space=sflag, size = 0x8, scoped, tag = 'scoped memory for tpu_custom_call.1']
    %16 = vsyncpa [#allocation3], 0
    %s17 = scalar_lea.sflag [#allocation3], 1
    %18 = vsyncpa %s17, 0
    %19 = vsyncpa [#allocation5], 0
    %s20 = scalar_lea.sflag [#allocation5], 1
    %21 = vsyncpa %s20, 0
    loop: start=0, step=1, limit=6
    $region2: #{tpu_custom_call.1} parent=1 // loop_pre_header
      _
    $region3: #{tpu_custom_call.1} parent=1 // loop_header
      %s23 = sphi 0, %s27
      %p24 = scmp.ge.s32.totalorder %s23, 6
      %s33 = sphi 0, %s35
      %s36 = sphi 0, %s33
      %s37 = sphi 0, %s36
      %s53 = sphi 0, %s37
      %s57 = sphi 0, %s57
      %s59 = sphi 0, %s57
      %s60 = sphi 0, %s59
      %s74 = sphi 0, %s60
      %s78 = sphi 0, %s78
      %s80 = sphi 0, %s78
      %s81 = sphi 0, %s80
      %s95 = sphi 0, %s81
      %s99 = sphi 0, %s99
      %s101 = sphi 0, %s99
      %s102 = sphi 0, %s101
      %s116 = sphi 0, %s102
      %s120 = sphi 0, %s120
      %s122 = sphi 0, %s120
      %s123 = sphi 0, %s122
      %s137 = sphi 0, %s123
      %s141 = sphi 0, %s141
      %s143 = sphi 0, %s141
      %s144 = sphi 0, %s143
      %s158 = sphi 0, %s144
      %s162 = sphi 0, %s162
      %s164 = sphi 0, %s162
      %s165 = sphi 0, %s164
      %s179 = sphi 0, %s165
      %s185 = sphi 0, %s187
      %s188 = sphi 0, %s185
      %s189 = sphi 0, %s188
      %s205 = sphi 0, %s189
      %s211 = sphi 0, %s213
      %s214 = sphi 0, %s211
      %s215 = sphi 0, %s214
      %s231 = sphi 0, %s215
      %s237 = sphi 0, %s239
      %s240 = sphi 0, %s237
      %s241 = sphi 0, %s240
      %s257 = sphi 0, %s241
      %s263 = sphi 0, %s265
      %s266 = sphi 0, %s263
      %s267 = sphi 0, %s266
      %s283 = sphi 0, %s267
    $region4: #{tpu_custom_call.1} parent=1 // loop_header_branch
      %26 = sbr.rel (%p24) target = $region8
    $region5: #{tpu_custom_call.1} parent=1 // loop_body
      %s28 = ssub.s32 %s23, 1
      %s29 = ssub.s32 %s23, 2
      %s30 = sadd.s32 %s23, 1
      %s31 = ssub.s32 %s23, %s30
      %p32 = scmp.eq.s32.totalorder %s31, 0
      %s34 = sadd.s32 %s33, 1
      %s35 = scalar_select %p32, %s33, %s34
      %p38 = pneg %p32
      %p39 = scmp.eq.s32.totalorder %s23, 3
      %p40 = por %p38, %p39
      %p41 = scmp.ne.s32.totalorder %s33, %s36
      %p42 = scmp.eq.s32.totalorder %s23, 0
      %p43 = por %p41, %p42
      %p44 = scmp.ne.s32.totalorder %s33, %s36
      %p45 = scmp.eq.s32.totalorder %s28, 3
      %p46 = por %p44, %p45
      %p47 = scmp.ne.s32.totalorder %s36, %s37
      %p48 = scmp.eq.s32.totalorder %s28, 0
      %p49 = por %p47, %p48
      %p50 = scmp.ne.s32.totalorder %s36, %s37
      %p51 = scmp.eq.s32.totalorder %s29, 3
      %p52 = por %p50, %p51
      %p54 = scmp.ne.s32.totalorder %s37, %s53
      %p55 = scmp.eq.s32.totalorder %s29, 0
      %p56 = por %p54, %p55
      %s58 = sadd.s32 %s57, 1
      %p61 = scmp.eq.s32.totalorder %s23, 3
      %p62 = scmp.ne.s32.totalorder %s57, %s59
      %p63 = scmp.eq.s32.totalorder %s23, 0
      %p64 = por %p62, %p63
      %p65 = scmp.ne.s32.totalorder %s57, %s59
      %p66 = scmp.eq.s32.totalorder %s28, 3
      %p67 = por %p65, %p66
      %p68 = scmp.ne.s32.totalorder %s59, %s60
      %p69 = scmp.eq.s32.totalorder %s28, 0
      %p70 = por %p68, %p69
      %p71 = scmp.ne.s32.totalorder %s59, %s60
      %p72 = scmp.eq.s32.totalorder %s29, 3
      %p73 = por %p71, %p72
      %p75 = scmp.ne.s32.totalorder %s60, %s74
      %p76 = scmp.eq.s32.totalorder %s29, 0
      %p77 = por %p75, %p76
      %s79 = sadd.s32 %s78, 1
      %p82 = scmp.eq.s32.totalorder %s23, 3
      %p83 = scmp.ne.s32.totalorder %s78, %s80
      %p84 = scmp.eq.s32.totalorder %s23, 0
      %p85 = por %p83, %p84
      %p86 = scmp.ne.s32.totalorder %s78, %s80
      %p87 = scmp.eq.s32.totalorder %s28, 3
      %p88 = por %p86, %p87
      %p89 = scmp.ne.s32.totalorder %s80, %s81
      %p90 = scmp.eq.s32.totalorder %s28, 0
      %p91 = por %p89, %p90
      %p92 = scmp.ne.s32.totalorder %s80, %s81
      %p93 = scmp.eq.s32.totalorder %s29, 3
      %p94 = por %p92, %p93
      %p96 = scmp.ne.s32.totalorder %s81, %s95
      %p97 = scmp.eq.s32.totalorder %s29, 0
      %p98 = por %p96, %p97
      %s100 = sadd.s32 %s99, 1
      %p103 = scmp.eq.s32.totalorder %s23, 3
      %p104 = scmp.ne.s32.totalorder %s99, %s101
      %p105 = scmp.eq.s32.totalorder %s23, 0
      %p106 = por %p104, %p105
      %p107 = scmp.ne.s32.totalorder %s99, %s101
      %p108 = scmp.eq.s32.totalorder %s28, 3
      %p109 = por %p107, %p108
      %p110 = scmp.ne.s32.totalorder %s101, %s102
      %p111 = scmp.eq.s32.totalorder %s28, 0
      %p112 = por %p110, %p111
      %p113 = scmp.ne.s32.totalorder %s101, %s102
      %p114 = scmp.eq.s32.totalorder %s29, 3
      %p115 = por %p113, %p114
      %p117 = scmp.ne.s32.totalorder %s102, %s116
      %p118 = scmp.eq.s32.totalorder %s29, 0
      %p119 = por %p117, %p118
      %s121 = sadd.s32 %s120, 1
      %p124 = scmp.eq.s32.totalorder %s23, 3
      %p125 = scmp.ne.s32.totalorder %s120, %s122
      %p126 = scmp.eq.s32.totalorder %s23, 0
      %p127 = por %p125, %p126
      %p128 = scmp.ne.s32.totalorder %s120, %s122
      %p129 = scmp.eq.s32.totalorder %s28, 3
      %p130 = por %p128, %p129
      %p131 = scmp.ne.s32.totalorder %s122, %s123
      %p132 = scmp.eq.s32.totalorder %s28, 0
      %p133 = por %p131, %p132
      %p134 = scmp.ne.s32.totalorder %s122, %s123
      %p135 = scmp.eq.s32.totalorder %s29, 3
      %p136 = por %p134, %p135
      %p138 = scmp.ne.s32.totalorder %s123, %s137
      %p139 = scmp.eq.s32.totalorder %s29, 0
      %p140 = por %p138, %p139
      %s142 = sadd.s32 %s141, 1
      %p145 = scmp.eq.s32.totalorder %s23, 3
      %p146 = scmp.ne.s32.totalorder %s141, %s143
      %p147 = scmp.eq.s32.totalorder %s23, 0
      %p148 = por %p146, %p147
      %p149 = scmp.ne.s32.totalorder %s141, %s143
      %p150 = scmp.eq.s32.totalorder %s28, 3
      %p151 = por %p149, %p150
      %p152 = scmp.ne.s32.totalorder %s143, %s144
      %p153 = scmp.eq.s32.totalorder %s28, 0
      %p154 = por %p152, %p153
      %p155 = scmp.ne.s32.totalorder %s143, %s144
      %p156 = scmp.eq.s32.totalorder %s29, 3
      %p157 = por %p155, %p156
      %p159 = scmp.ne.s32.totalorder %s144, %s158
      %p160 = scmp.eq.s32.totalorder %s29, 0
      %p161 = por %p159, %p160
      %s163 = sadd.s32 %s162, 1
      %p166 = scmp.eq.s32.totalorder %s23, 3
      %p167 = scmp.ne.s32.totalorder %s162, %s164
      %p168 = scmp.eq.s32.totalorder %s23, 0
      %p169 = por %p167, %p168
      %p170 = scmp.ne.s32.totalorder %s162, %s164
      %p171 = scmp.eq.s32.totalorder %s28, 3
      %p172 = por %p170, %p171
      %p173 = scmp.ne.s32.totalorder %s164, %s165
      %p174 = scmp.eq.s32.totalorder %s28, 0
      %p175 = por %p173, %p174
      %p176 = scmp.ne.s32.totalorder %s164, %s165
      %p177 = scmp.eq.s32.totalorder %s29, 3
      %p178 = por %p176, %p177
      %p180 = scmp.ne.s32.totalorder %s165, %s179
      %p181 = scmp.eq.s32.totalorder %s29, 0
      %p182 = por %p180, %p181
      %s183 = ssub.s32 %s23, %s30
      %p184 = scmp.eq.s32.totalorder %s183, 0
      %s186 = sadd.s32 %s185, 1
      %s187 = scalar_select %p184, %s185, %s186
      %p190 = pneg %p184
      %p191 = scmp.eq.s32.totalorder %s23, 3
      %p192 = por %p190, %p191
      %p193 = scmp.ne.s32.totalorder %s185, %s188
      %p194 = scmp.eq.s32.totalorder %s23, 0
      %p195 = por %p193, %p194
      %p196 = scmp.ne.s32.totalorder %s185, %s188
      %p197 = scmp.eq.s32.totalorder %s28, 3
      %p198 = por %p196, %p197
      %p199 = scmp.ne.s32.totalorder %s188, %s189
      %p200 = scmp.eq.s32.totalorder %s28, 0
      %p201 = por %p199, %p200
      %p202 = scmp.ne.s32.totalorder %s188, %s189
      %p203 = scmp.eq.s32.totalorder %s29, 3
      %p204 = por %p202, %p203
      %p206 = scmp.ne.s32.totalorder %s189, %s205
      %p207 = scmp.eq.s32.totalorder %s29, 0
      %p208 = por %p206, %p207
      %s209 = ssub.s32 %s23, %s30
      %p210 = scmp.eq.s32.totalorder %s209, 0
      %s212 = sadd.s32 %s211, 1
      %s213 = scalar_select %p210, %s211, %s212
      %p216 = pneg %p210
      %p217 = scmp.eq.s32.totalorder %s23, 3
      %p218 = por %p216, %p217
      %p219 = scmp.ne.s32.totalorder %s211, %s214
      %p220 = scmp.eq.s32.totalorder %s23, 0
      %p221 = por %p219, %p220
      %p222 = scmp.ne.s32.totalorder %s211, %s214
      %p223 = scmp.eq.s32.totalorder %s28, 3
      %p224 = por %p222, %p223
      %p225 = scmp.ne.s32.totalorder %s214, %s215
      %p226 = scmp.eq.s32.totalorder %s28, 0
      %p227 = por %p225, %p226
      %p228 = scmp.ne.s32.totalorder %s214, %s215
      %p229 = scmp.eq.s32.totalorder %s29, 3
      %p230 = por %p228, %p229
      %p232 = scmp.ne.s32.totalorder %s215, %s231
      %p233 = scmp.eq.s32.totalorder %s29, 0
      %p234 = por %p232, %p233
      %s235 = ssub.s32 %s23, %s30
      %p236 = scmp.eq.s32.totalorder %s235, 0
      %s238 = sadd.s32 %s237, 1
      %s239 = scalar_select %p236, %s237, %s238
      %p242 = pneg %p236
      %p243 = scmp.eq.s32.totalorder %s23, 3
      %p244 = por %p242, %p243
      %p245 = scmp.ne.s32.totalorder %s237, %s240
      %p246 = scmp.eq.s32.totalorder %s23, 0
      %p247 = por %p245, %p246
      %p248 = scmp.ne.s32.totalorder %s237, %s240
      %p249 = scmp.eq.s32.totalorder %s28, 3
      %p250 = por %p248, %p249
      %p251 = scmp.ne.s32.totalorder %s240, %s241
      %p252 = scmp.eq.s32.totalorder %s28, 0
      %p253 = por %p251, %p252
      %p254 = scmp.ne.s32.totalorder %s240, %s241
      %p255 = scmp.eq.s32.totalorder %s29, 3
      %p256 = por %p254, %p255
      %p258 = scmp.ne.s32.totalorder %s241, %s257
      %p259 = scmp.eq.s32.totalorder %s29, 0
      %p260 = por %p258, %p259
      %s261 = ssub.s32 %s23, %s30
      %p262 = scmp.eq.s32.totalorder %s261, 0
      %s264 = sadd.s32 %s263, 1
      %s265 = scalar_select %p262, %s263, %s264
      %p268 = pneg %p262
      %p269 = scmp.eq.s32.totalorder %s23, 3
      %p270 = por %p268, %p269
      %p271 = scmp.ne.s32.totalorder %s263, %s266
      %p272 = scmp.eq.s32.totalorder %s23, 0
      %p273 = por %p271, %p272
      %p274 = scmp.ne.s32.totalorder %s263, %s266
      %p275 = scmp.eq.s32.totalorder %s28, 3
      %p276 = por %p274, %p275
      %p277 = scmp.ne.s32.totalorder %s266, %s267
      %p278 = scmp.eq.s32.totalorder %s28, 0
      %p279 = por %p277, %p278
      %p280 = scmp.ne.s32.totalorder %s266, %s267
      %p281 = scmp.eq.s32.totalorder %s29, 3
      %p282 = por %p280, %p281
      %p284 = scmp.ne.s32.totalorder %s267, %s283
      %p285 = scmp.eq.s32.totalorder %s29, 0
      %p286 = por %p284, %p285
      %p287 = scmp.le.s32.totalorder 1, %s23
      %p288 = scmp.lt.s32.totalorder %s23, 5
      %p289 = pnand %p287, %p288
      %p290 = pneg %p289
      // Predicated region
      $region9: #{tpu_custom_call.1} parent=5 // pred_check
        _
      $region10: #{tpu_custom_call.1} parent=5 // pred_check_branch
        %292 = sbr.rel (%p289) target = $region12
      $region11: #{tpu_custom_call.1} parent=5 // pred_region
        %s293 = ssub.s32 %s23, 1
        // Predicated region
        $region13: #{tpu_custom_call.1} parent=11 // pred_check
          %p294 = pneg %p70
        $region14: #{tpu_custom_call.1} parent=11 // pred_check_branch
          %296 = sbr.rel (%p294) target = $region16
        $region15: #{tpu_custom_call.1} parent=11 // pred_region
          _
        $region16: #{tpu_custom_call.1} parent=11 // pred_fallthru
          _
        // Predicated region
        $region17: #{tpu_custom_call.1} parent=11 // pred_check
          %p297 = pneg %p91
        $region18: #{tpu_custom_call.1} parent=11 // pred_check_branch
          %299 = sbr.rel (%p297) target = $region20
        $region19: #{tpu_custom_call.1} parent=11 // pred_region
          _
        $region20: #{tpu_custom_call.1} parent=11 // pred_fallthru
          _
        // Predicated region
        $region21: #{tpu_custom_call.1} parent=11 // pred_check
          %p300 = pneg %p112
        $region22: #{tpu_custom_call.1} parent=11 // pred_check_branch
          %302 = sbr.rel (%p300) target = $region24
        $region23: #{tpu_custom_call.1} parent=11 // pred_region
          _
        $region24: #{tpu_custom_call.1} parent=11 // pred_fallthru
          _
        // Predicated region
        $region25: #{tpu_custom_call.1} parent=11 // pred_check
          %p303 = pneg %p133
        $region26: #{tpu_custom_call.1} parent=11 // pred_check_branch
          %305 = sbr.rel (%p303) target = $region28
        $region27: #{tpu_custom_call.1} parent=11 // pred_region
          _
        $region28: #{tpu_custom_call.1} parent=11 // pred_fallthru
          _
        // Predicated region
        $region29: #{tpu_custom_call.1} parent=11 // pred_check
          %p306 = pneg %p154
        $region30: #{tpu_custom_call.1} parent=11 // pred_check_branch
          %308 = sbr.rel (%p306) target = $region32
        $region31: #{tpu_custom_call.1} parent=11 // pred_region
          _
        $region32: #{tpu_custom_call.1} parent=11 // pred_fallthru
          _
        // Predicated region
        $region33: #{tpu_custom_call.1} parent=11 // pred_check
          %p309 = pneg %p175
        $region34: #{tpu_custom_call.1} parent=11 // pred_check_branch
          %311 = sbr.rel (%p309) target = $region36
        $region35: #{tpu_custom_call.1} parent=11 // pred_region
          _
        $region36: #{tpu_custom_call.1} parent=11 // pred_fallthru
          _
      $region12: #{tpu_custom_call.1} parent=5 // pred_fallthru
        _
      %p312 = scmp.lt.s32.totalorder %s23, 4
      // Predicated region
      $region37: #{tpu_custom_call.1} parent=5 // pred_check
        %p313 = pneg %p312
      $region38: #{tpu_custom_call.1} parent=5 // pred_check_branch
        %315 = sbr.rel (%p313) target = $region40
      $region39: #{tpu_custom_call.1} parent=5 // pred_region
        // Predicated region
        $region41: #{tpu_custom_call.1} parent=39 // pred_check
          %p316 = pneg %p43
        $region42: #{tpu_custom_call.1} parent=39 // pred_check_branch
          %318 = sbr.rel (%p316) target = $region44
        $region43: #{tpu_custom_call.1} parent=39 // pred_region
          %s319 = smul.u32 4, %s23
          %p320 = scmp.lt.s32.totalorder %s319, 15
          %s321 = scalar_select %p320, %s319, 15
          %s322 = smul.addr %s321, 8
          %s323 = scalar_lea.vmem %s0, %s322
          %s324 = smul.u32 4, %s23
        $region44: #{tpu_custom_call.1} parent=39 // pred_fallthru
          _
      $region40: #{tpu_custom_call.1} parent=5 // pred_fallthru
        _
      %p325 = scmp.le.s32.totalorder 1, %s23
      %p326 = scmp.lt.s32.totalorder %s23, 5
      %p327 = pnand %p325, %p326
      %p328 = pneg %p327
      // Predicated region
      $region45: #{tpu_custom_call.1} parent=5 // pred_check
        _
      $region46: #{tpu_custom_call.1} parent=5 // pred_check_branch
        %330 = sbr.rel (%p327) target = $region48
      $region47: #{tpu_custom_call.1} parent=5 // pred_region
        %s331 = ssub.s32 %s23, 1
        %s332 = smul.u32 4, %s28
        %p333 = scmp.lt.s32.totalorder %s332, 15
        %s334 = scalar_select %p333, %s332, 15
        %s335 = smul.addr %s334, 8
        %s336 = scalar_lea.vmem %s0, %s335
        %p337 = pneg %p49
        %p338 = pneg %p46
        %p339 = pneg %p70
        %p340 = pneg %p67
        %p341 = pneg %p91
        %p342 = pneg %p88
        %p343 = pneg %p112
        %p344 = pneg %p109
        %p345 = pneg %p133
        %p346 = pneg %p130
        %p347 = pneg %p154
        %p348 = pneg %p151
        %p349 = pneg %p175
        %p350 = pneg %p172
        %p351 = pneg %p201
        %p352 = pneg %p198
        %s353 = smul.u32 4, %s28
        %p354 = scmp.lt.s32.totalorder %s353, 15
        %s355 = scalar_select %p354, %s353, 15
        %s356 = smul.addr %s355, 8
        %s357 = scalar_lea.vmem %s7, %s356
        %p358 = pneg %p227
        %p359 = pneg %p224
        %s360 = smul.u32 4, %s28
        %p361 = scmp.lt.s32.totalorder %s360, 15
        %s362 = scalar_select %p361, %s360, 15
        %s363 = smul.addr %s362, 8
        %s364 = scalar_lea.vmem %s8, %s363
        %p365 = pneg %p253
        %p366 = pneg %p250
        %s367 = sand.u32 %s240, 1
        %s368 = scalar_lea.sflag [#allocation3], %s367
        %s369 = sand.u32 %s240, 1
        %s370 = scalar_lea.vmem [#allocation2], %s369
        %p371 = pneg %p279
        %p372 = pneg %p276
        %s373 = sand.u32 %s266, 1
        %s374 = scalar_lea.sflag [#allocation5], %s373
        %s375 = sand.u32 %s266, 1
        %s376 = scalar_lea.vmem [#allocation4], %s375
        %s377 = smul.u32 4, %s28
        %p378 = scmp.lt.s32.totalorder %s377, 15
        %s379 = scalar_select %p378, %s377, 15
        %s380 = smul.addr %s379, 8
        %s381 = scalar_lea.vmem %s0, %s380
        %s382 = smul.u32 4, %s28
        %s383 = smul.u32 4, %s28
        %p384 = scmp.lt.s32.totalorder %s383, 15
        %s385 = scalar_select %p384, %s383, 15
        %s386 = smul.addr %s385, 8
        %s387 = scalar_lea.vmem %s7, %s386
        %s388 = smul.u32 4, %s28
        %s389 = smul.u32 4, %s28
        %p390 = scmp.lt.s32.totalorder %s389, 15
        %s391 = scalar_select %p390, %s389, 15
        %s392 = smul.addr %s391, 8
        %s393 = scalar_lea.vmem %s8, %s392
        %s394 = smul.u32 4, %s28
        %v395 = vld [vmem:[%s381] sm:$0xff]
        %v396 = vld [vmem:[%s381 + $0x8] sm:$0xff]
        %v397 = vld [vmem:[%s381 + $0x10] sm:$0xff]
        %v398 = vld [vmem:[%s381 + $0x18] sm:$0xff]
        %v399 = vld [vmem:[%s1] sm:$0xff]
        %v400 = vld [vmem:[%s1 + $0x8] sm:$0xff]
        %v401 = vld [vmem:[%s2] sm:$0x1]
        %v403 = vlaneseq
        %v404 = vshrl.u32 %v403, 7
        %v405 = vsub.s32 0, %v404
        %v406 = vrot.slane %v401, %v405
        %vm408 = vcmask 130048
        %v410 = vsel %vm408, %v395, 0
        %v413 = vsel %vm408, %v396, 0
        %v416 = vsel %vm408, %v397, 0
        %v419 = vsel %vm408, %v398, 0
        %421 = vmatprep.subr.mxu0 0.0
        %422 = vmatpush1.msra.mxu0 %v399
        %423 = vmatprep.subr.mxu0 0.0
        %424 = vmatpush1.msra.mxu0 %v400
        %425 = vmatprep.subr.mxu0 0.0
        %426 = vmatpush1.msra.mxu0 0.0
        %427 = vmatprep.subr.mxu0 0.0
        %428 = vmatpush1.msra.mxu0 0.0
        %429 = vmatprep.subr.mxu0 0.0
        %430 = vmatpush1.msra.mxu0 0.0
        %431 = vmatprep.subr.mxu0 0.0
        %432 = vmatpush1.msra.mxu0 0.0
        %433 = vmatprep.subr.mxu0 0.0
        %434 = vmatpush1.msra.mxu0 0.0
        %435 = vmatprep.subr.mxu0 0.0
        %436 = vmatpush1.msra.mxu0 0.0
        %437 = vmatprep.subr.mxu0 0.0
        %438 = vmatpush1.msra.mxu0 0.0
        %439 = vmatprep.subr.mxu0 0.0
        %440 = vmatpush1.msra.mxu0 0.0
        %441 = vmatprep.subr.mxu0 0.0
        %442 = vmatpush1.msra.mxu0 0.0
        %443 = vmatprep.subr.mxu0 0.0
        %444 = vmatpush1.msra.mxu0 0.0
        %445 = vmatprep.subr.mxu0 0.0
        %446 = vmatpush1.msra.mxu0 0.0
        %447 = vmatprep.subr.mxu0 0.0
        %448 = vmatpush1.msra.mxu0 0.0
        %449 = vmatprep.subr.mxu0 0.0
        %450 = vmatpush1.msra.mxu0 0.0
        %451 = vmatprep.subr.mxu0 0.0
        %452 = vmatpush1.msra.mxu0 0.0
        %453 = vmatprep.subr.mxu0 0.0
        %454 = vmatpush1.msra.mxu0 0.0
        %455 = vmatprep.subr.mxu0 0.0
        %456 = vmatpush1.msra.mxu0 0.0
        %457 = vmatprep.subr.mxu0 0.0
        %458 = vmatpush1.msra.mxu0 0.0
        %459 = vmatprep.subr.mxu0 0.0
        %460 = vmatpush1.msra.mxu0 0.0
        %461 = vmatprep.subr.mxu0 0.0
        %462 = vmatpush1.msra.mxu0 0.0
        %463 = vmatprep.subr.mxu0 0.0
        %464 = vmatpush1.msra.mxu0 0.0
        %465 = vmatprep.subr.mxu0 0.0
        %466 = vmatpush1.msra.mxu0 0.0
        %467 = vmatprep.subr.mxu0 0.0
        %468 = vmatpush1.msra.mxu0 0.0
        %469 = vmatprep.subr.mxu0 0.0
        %470 = vmatpush1.msra.mxu0 0.0
        %471 = vmatprep.subr.mxu0 0.0
        %472 = vmatpush1.msra.mxu0 0.0
        %473 = vmatprep.subr.mxu0 0.0
        %474 = vmatpush1.msra.mxu0 0.0
        %475 = vmatprep.subr.mxu0 0.0
        %476 = vmatpush1.msra.mxu0 0.0
        %477 = vmatprep.subr.mxu0 0.0
        %478 = vmatpush1.msra.mxu0 0.0
        %479 = vmatprep.subr.mxu0 0.0
        %480 = vmatpush1.msra.mxu0 0.0
        %481 = vmatprep.subr.mxu0 0.0
        %482 = vmatpush1.msra.mxu0 0.0
        %483 = vmatprep.subr.mxu0 0.0
        %484 = vmatpush1.msra.mxu0 0.0
        %485 = vmatprep.mubr.f32.mxu0 0.0
        %486 = vmatmul.mubr.f32.gmra.mrb[0].mxu0 %v410
        %v487 = vpop.f32.mrb[0].mxu0
        %v488 = vadd.f32 %v406, %v487
        %v489 = vpop.f32.mrb[0].mxu0
        %490 = vmatprep.mubr.f32.mxu0 0.0
        %491 = vmatmul.mubr.f32.gmra.mrb[0].mxu0 %v413
        %v492 = vpop.f32.mrb[0].mxu0
        %v493 = vadd.f32 %v406, %v492
        %v494 = vpop.f32.mrb[0].mxu0
        %495 = vmatprep.mubr.f32.mxu0 0.0
        %496 = vmatmul.mubr.f32.gmra.mrb[0].mxu0 %v416
        %v497 = vpop.f32.mrb[0].mxu0
        %v498 = vadd.f32 %v406, %v497
        %v499 = vpop.f32.mrb[0].mxu0
        %500 = vmatprep.mubr.f32.mxu0 0.0
        %501 = vmatmul.mubr.f32.gmra.mrb[0].mxu0 %v419
        %v502 = vpop.f32.mrb[0].mxu0
        %v503 = vadd.f32 %v406, %v502
        %v504 = vpop.f32.mrb[0].mxu0
        %505 = vdwg.mxu0
        %v506 = vld [vmem:[%s3] sm:$0xff]
        %v507 = vld [vmem:[%s3 + $0x8] sm:$0xff]
        %v508 = vld [vmem:[%s4] sm:$0x1]
        %v510 = vlaneseq
        %v511 = vshrl.u32 %v510, 7
        %v512 = vsub.s32 0, %v511
        %v513 = vrot.slane %v508, %v512
        %515 = vmatprep.subr.mxu0 0.0
        %516 = vmatpush1.msra.mxu0 %v506
        %517 = vmatprep.subr.mxu0 0.0
        %518 = vmatpush1.msra.mxu0 %v507
        %519 = vmatprep.subr.mxu0 0.0
        %520 = vmatpush1.msra.mxu0 0.0
        %521 = vmatprep.subr.mxu0 0.0
        %522 = vmatpush1.msra.mxu0 0.0
        %523 = vmatprep.subr.mxu0 0.0
        %524 = vmatpush1.msra.mxu0 0.0
        %525 = vmatprep.subr.mxu0 0.0
        %526 = vmatpush1.msra.mxu0 0.0
        %527 = vmatprep.subr.mxu0 0.0
        %528 = vmatpush1.msra.mxu0 0.0
        %529 = vmatprep.subr.mxu0 0.0
        %530 = vmatpush1.msra.mxu0 0.0
        %531 = vmatprep.subr.mxu0 0.0
        %532 = vmatpush1.msra.mxu0 0.0
        %533 = vmatprep.subr.mxu0 0.0
        %534 = vmatpush1.msra.mxu0 0.0
        %535 = vmatprep.subr.mxu0 0.0
        %536 = vmatpush1.msra.mxu0 0.0
        %537 = vmatprep.subr.mxu0 0.0
        %538 = vmatpush1.msra.mxu0 0.0
        %539 = vmatprep.subr.mxu0 0.0
        %540 = vmatpush1.msra.mxu0 0.0
        %541 = vmatprep.subr.mxu0 0.0
        %542 = vmatpush1.msra.mxu0 0.0
        %543 = vmatprep.subr.mxu0 0.0
        %544 = vmatpush1.msra.mxu0 0.0
        %545 = vmatprep.subr.mxu0 0.0
        %546 = vmatpush1.msra.mxu0 0.0
        %547 = vmatprep.subr.mxu0 0.0
        %548 = vmatpush1.msra.mxu0 0.0
        %549 = vmatprep.subr.mxu0 0.0
        %550 = vmatpush1.msra.mxu0 0.0
        %551 = vmatprep.subr.mxu0 0.0
        %552 = vmatpush1.msra.mxu0 0.0
        %553 = vmatprep.subr.mxu0 0.0
        %554 = vmatpush1.msra.mxu0 0.0
        %555 = vmatprep.subr.mxu0 0.0
        %556 = vmatpush1.msra.mxu0 0.0
        %557 = vmatprep.subr.mxu0 0.0
        %558 = vmatpush1.msra.mxu0 0.0
        %559 = vmatprep.subr.mxu0 0.0
        %560 = vmatpush1.msra.mxu0 0.0
        %561 = vmatprep.subr.mxu0 0.0
        %562 = vmatpush1.msra.mxu0 0.0
        %563 = vmatprep.subr.mxu0 0.0
        %564 = vmatpush1.msra.mxu0 0.0
        %565 = vmatprep.subr.mxu0 0.0
        %566 = vmatpush1.msra.mxu0 0.0
        %567 = vmatprep.subr.mxu0 0.0
        %568 = vmatpush1.msra.mxu0 0.0
        %569 = vmatprep.subr.mxu0 0.0
        %570 = vmatpush1.msra.mxu0 0.0
        %571 = vmatprep.subr.mxu0 0.0
        %572 = vmatpush1.msra.mxu0 0.0
        %573 = vmatprep.subr.mxu0 0.0
        %574 = vmatpush1.msra.mxu0 0.0
        %575 = vmatprep.subr.mxu0 0.0
        %576 = vmatpush1.msra.mxu0 0.0
        %577 = vmatprep.subr.mxu0 0.0
        %578 = vmatpush1.msra.mxu0 0.0
        %579 = vmatprep.mubr.f32.mxu0 0.0
        %580 = vmatmul.mubr.f32.gmra.mrb[0].mxu0 %v410
        %v581 = vpop.f32.mrb[0].mxu0
        %v582 = vadd.f32 %v513, %v581
        %v583 = vpop.f32.mrb[0].mxu0
        %584 = vmatprep.mubr.f32.mxu0 0.0
        %585 = vmatmul.mubr.f32.gmra.mrb[0].mxu0 %v413
        %v586 = vpop.f32.mrb[0].mxu0
        %v587 = vadd.f32 %v513, %v586
        %v588 = vpop.f32.mrb[0].mxu0
        %589 = vmatprep.mubr.f32.mxu0 0.0
        %590 = vmatmul.mubr.f32.gmra.mrb[0].mxu0 %v416
        %v591 = vpop.f32.mrb[0].mxu0
        %v592 = vadd.f32 %v513, %v591
        %v593 = vpop.f32.mrb[0].mxu0
        %594 = vmatprep.mubr.f32.mxu0 0.0
        %595 = vmatmul.mubr.f32.gmra.mrb[0].mxu0 %v419
        %v596 = vpop.f32.mrb[0].mxu0
        %v597 = vadd.f32 %v513, %v596
        %v598 = vpop.f32.mrb[0].mxu0
        %599 = vdwg.mxu0
        %vm600 = vcmask 64512
        %601 = vst.msk [vmem:[%s387] sm:$0xff] %vm600, %v488
        %602 = vst.msk [vmem:[%s387 + $0x8] sm:$0xff] %vm600, %v493
        %603 = vst.msk [vmem:[%s387 + $0x10] sm:$0xff] %vm600, %v498
        %604 = vst.msk [vmem:[%s387 + $0x18] sm:$0xff] %vm600, %v503
        %vm605 = vcmask 261120
        %606 = vst.msk [vmem:[%s393] sm:$0xff] %vm605, %v582
        %607 = vst.msk [vmem:[%s393 + $0x8] sm:$0xff] %vm605, %v587
        %608 = vst.msk [vmem:[%s393 + $0x10] sm:$0xff] %vm605, %v592
        %609 = vst.msk [vmem:[%s393 + $0x18] sm:$0xff] %vm605, %v597
        %v610 = vld [vmem:[%s5] sm:$0xff]
        %v612 = vsel %vm600, %v488, 0
        %v615 = vsel %vm600, %v493, 0
        %v618 = vsel %vm600, %v498, 0
        %v621 = vsel %vm600, %v503, 0
        %623 = vmatprep.subr.mxu0 0.0
        %624 = vmatpush1.msra.mxu0 %v610
        %625 = vmatprep.subr.mxu0 0.0
        %626 = vmatpush1.msra.mxu0 0.0
        %627 = vmatprep.subr.mxu0 0.0
        %628 = vmatpush1.msra.mxu0 0.0
        %629 = vmatprep.subr.mxu0 0.0
        %630 = vmatpush1.msra.mxu0 0.0
        %631 = vmatprep.subr.mxu0 0.0
        %632 = vmatpush1.msra.mxu0 0.0
        %633 = vmatprep.subr.mxu0 0.0
        %634 = vmatpush1.msra.mxu0 0.0
        %635 = vmatprep.subr.mxu0 0.0
        %636 = vmatpush1.msra.mxu0 0.0
        %637 = vmatprep.subr.mxu0 0.0
        %638 = vmatpush1.msra.mxu0 0.0
        %639 = vmatprep.subr.mxu0 0.0
        %640 = vmatpush1.msra.mxu0 0.0
        %641 = vmatprep.subr.mxu0 0.0
        %642 = vmatpush1.msra.mxu0 0.0
        %643 = vmatprep.subr.mxu0 0.0
        %644 = vmatpush1.msra.mxu0 0.0
        %645 = vmatprep.subr.mxu0 0.0
        %646 = vmatpush1.msra.mxu0 0.0
        %647 = vmatprep.subr.mxu0 0.0
        %648 = vmatpush1.msra.mxu0 0.0
        %649 = vmatprep.subr.mxu0 0.0
        %650 = vmatpush1.msra.mxu0 0.0
        %651 = vmatprep.subr.mxu0 0.0
        %652 = vmatpush1.msra.mxu0 0.0
        %653 = vmatprep.subr.mxu0 0.0
        %654 = vmatpush1.msra.mxu0 0.0
        %655 = vmatprep.subr.mxu0 0.0
        %656 = vmatpush1.msra.mxu0 0.0
        %657 = vmatprep.subr.mxu0 0.0
        %658 = vmatpush1.msra.mxu0 0.0
        %659 = vmatprep.subr.mxu0 0.0
        %660 = vmatpush1.msra.mxu0 0.0
        %661 = vmatprep.subr.mxu0 0.0
        %662 = vmatpush1.msra.mxu0 0.0
        %663 = vmatprep.subr.mxu0 0.0
        %664 = vmatpush1.msra.mxu0 0.0
        %665 = vmatprep.subr.mxu0 0.0
        %666 = vmatpush1.msra.mxu0 0.0
        %667 = vmatprep.subr.mxu0 0.0
        %668 = vmatpush1.msra.mxu0 0.0
        %669 = vmatprep.subr.mxu0 0.0
        %670 = vmatpush1.msra.mxu0 0.0
        %671 = vmatprep.subr.mxu0 0.0
        %672 = vmatpush1.msra.mxu0 0.0
        %673 = vmatprep.subr.mxu0 0.0
        %674 = vmatpush1.msra.mxu0 0.0
        %675 = vmatprep.subr.mxu0 0.0
        %676 = vmatpush1.msra.mxu0 0.0
        %677 = vmatprep.subr.mxu0 0.0
        %678 = vmatpush1.msra.mxu0 0.0
        %679 = vmatprep.subr.mxu0 0.0
        %680 = vmatpush1.msra.mxu0 0.0
        %681 = vmatprep.subr.mxu0 0.0
        %682 = vmatpush1.msra.mxu0 0.0
        %683 = vmatprep.subr.mxu0 0.0
        %684 = vmatpush1.msra.mxu0 0.0
        %685 = vmatprep.subr.mxu0 0.0
        %686 = vmatpush1.msra.mxu0 0.0
        %687 = vmatprep.mubr.f32.mxu0 0.0
        %688 = vmatmul.mubr.f32.gmra.mrb[0].mxu0 %v612
        %v689 = vpop.f32.mrb[0].mxu0
        %v690 = vadd.f32 0.0, %v689
        %v691 = vpop.f32.mrb[0].mxu0
        %692 = vmatprep.mubr.f32.mxu0 0.0
        %693 = vmatmul.mubr.f32.gmra.mrb[0].mxu0 %v615
        %v694 = vpop.f32.mrb[0].mxu0
        %v695 = vadd.f32 0.0, %v694
        %v696 = vpop.f32.mrb[0].mxu0
        %697 = vmatprep.mubr.f32.mxu0 0.0
        %698 = vmatmul.mubr.f32.gmra.mrb[0].mxu0 %v618
        %v699 = vpop.f32.mrb[0].mxu0
        %v700 = vadd.f32 0.0, %v699
        %v701 = vpop.f32.mrb[0].mxu0
        %702 = vmatprep.mubr.f32.mxu0 0.0
        %703 = vmatmul.mubr.f32.gmra.mrb[0].mxu0 %v621
        %v704 = vpop.f32.mrb[0].mxu0
        %v705 = vadd.f32 0.0, %v704
        %v706 = vpop.f32.mrb[0].mxu0
        %707 = vdwg.mxu0
        %vm708 = vcmask 31744
        %v709 = vsel %vm708, %v690, 0.0
        %v710 = vsel %vm708, %v695, 0.0
        %v711 = vadd.f32 %v709, %v710
        %v712 = vsel %vm708, %v700, 0.0
        %v713 = vadd.f32 %v711, %v712
        %v714 = vsel %vm708, %v705, 0.0
        %v715 = vadd.f32 %v713, %v714
        %v716 = vrot.slane %v715, 4
        %v717 = vadd.f32 %v715, %v716
        %v718 = vrot.slane %v717, 2
        %v719 = vadd.f32 %v717, %v718
        %v720 = vrot.slane %v719, 1
        %v721 = vadd.f32 %v719, %v720
        %v722 = vmul.f32 %v488, %v488
        %v723 = vmul.f32 %v493, %v493
        %v724 = vmul.f32 %v498, %v498
        %v725 = vmul.f32 %v503, %v503
        %v727 = vsel %vm600, %v722, 0
        %v730 = vsel %vm600, %v723, 0
        %v733 = vsel %vm600, %v724, 0
        %v736 = vsel %vm600, %v725, 0
        %738 = vmatprep.subr.mxu0 0.0
        %739 = vmatpush1.msra.mxu0 %v610
        %740 = vmatprep.subr.mxu0 0.0
        %741 = vmatpush1.msra.mxu0 0.0
        %742 = vmatprep.subr.mxu0 0.0
        %743 = vmatpush1.msra.mxu0 0.0
        %744 = vmatprep.subr.mxu0 0.0
        %745 = vmatpush1.msra.mxu0 0.0
        %746 = vmatprep.subr.mxu0 0.0
        %747 = vmatpush1.msra.mxu0 0.0
        %748 = vmatprep.subr.mxu0 0.0
        %749 = vmatpush1.msra.mxu0 0.0
        %750 = vmatprep.subr.mxu0 0.0
        %751 = vmatpush1.msra.mxu0 0.0
        %752 = vmatprep.subr.mxu0 0.0
        %753 = vmatpush1.msra.mxu0 0.0
        %754 = vmatprep.subr.mxu0 0.0
        %755 = vmatpush1.msra.mxu0 0.0
        %756 = vmatprep.subr.mxu0 0.0
        %757 = vmatpush1.msra.mxu0 0.0
        %758 = vmatprep.subr.mxu0 0.0
        %759 = vmatpush1.msra.mxu0 0.0
        %760 = vmatprep.subr.mxu0 0.0
        %761 = vmatpush1.msra.mxu0 0.0
        %762 = vmatprep.subr.mxu0 0.0
        %763 = vmatpush1.msra.mxu0 0.0
        %764 = vmatprep.subr.mxu0 0.0
        %765 = vmatpush1.msra.mxu0 0.0
        %766 = vmatprep.subr.mxu0 0.0
        %767 = vmatpush1.msra.mxu0 0.0
        %768 = vmatprep.subr.mxu0 0.0
        %769 = vmatpush1.msra.mxu0 0.0
        %770 = vmatprep.subr.mxu0 0.0
        %771 = vmatpush1.msra.mxu0 0.0
        %772 = vmatprep.subr.mxu0 0.0
        %773 = vmatpush1.msra.mxu0 0.0
        %774 = vmatprep.subr.mxu0 0.0
        %775 = vmatpush1.msra.mxu0 0.0
        %776 = vmatprep.subr.mxu0 0.0
        %777 = vmatpush1.msra.mxu0 0.0
        %778 = vmatprep.subr.mxu0 0.0
        %779 = vmatpush1.msra.mxu0 0.0
        %780 = vmatprep.subr.mxu0 0.0
        %781 = vmatpush1.msra.mxu0 0.0
        %782 = vmatprep.subr.mxu0 0.0
        %783 = vmatpush1.msra.mxu0 0.0
        %784 = vmatprep.subr.mxu0 0.0
        %785 = vmatpush1.msra.mxu0 0.0
        %786 = vmatprep.subr.mxu0 0.0
        %787 = vmatpush1.msra.mxu0 0.0
        %788 = vmatprep.subr.mxu0 0.0
        %789 = vmatpush1.msra.mxu0 0.0
        %790 = vmatprep.subr.mxu0 0.0
        %791 = vmatpush1.msra.mxu0 0.0
        %792 = vmatprep.subr.mxu0 0.0
        %793 = vmatpush1.msra.mxu0 0.0
        %794 = vmatprep.subr.mxu0 0.0
        %795 = vmatpush1.msra.mxu0 0.0
        %796 = vmatprep.subr.mxu0 0.0
        %797 = vmatpush1.msra.mxu0 0.0
        %798 = vmatprep.subr.mxu0 0.0
        %799 = vmatpush1.msra.mxu0 0.0
        %800 = vmatprep.subr.mxu0 0.0
        %801 = vmatpush1.msra.mxu0 0.0
        %802 = vmatprep.mubr.f32.mxu0 0.0
        %803 = vmatmul.mubr.f32.gmra.mrb[0].mxu0 %v727
        %v804 = vpop.f32.mrb[0].mxu0
        %v805 = vadd.f32 0.0, %v804
        %v806 = vpop.f32.mrb[0].mxu0
        %807 = vmatprep.mubr.f32.mxu0 0.0
        %808 = vmatmul.mubr.f32.gmra.mrb[0].mxu0 %v730
        %v809 = vpop.f32.mrb[0].mxu0
        %v810 = vadd.f32 0.0, %v809
        %v811 = vpop.f32.mrb[0].mxu0
        %812 = vmatprep.mubr.f32.mxu0 0.0
        %813 = vmatmul.mubr.f32.gmra.mrb[0].mxu0 %v733
        %v814 = vpop.f32.mrb[0].mxu0
        %v815 = vadd.f32 0.0, %v814
        %v816 = vpop.f32.mrb[0].mxu0
        %817 = vmatprep.mubr.f32.mxu0 0.0
        %818 = vmatmul.mubr.f32.gmra.mrb[0].mxu0 %v736
        %v819 = vpop.f32.mrb[0].mxu0
        %v820 = vadd.f32 0.0, %v819
        %v821 = vpop.f32.mrb[0].mxu0
        %822 = vdwg.mxu0
        %v823 = vsel %vm708, %v805, 0.0
        %v824 = vsel %vm708, %v810, 0.0
        %v825 = vadd.f32 %v823, %v824
        %v826 = vsel %vm708, %v815, 0.0
        %v827 = vadd.f32 %v825, %v826
        %v828 = vsel %vm708, %v820, 0.0
        %v829 = vadd.f32 %v827, %v828
        %v830 = vrot.slane %v829, 4
        %v831 = vadd.f32 %v829, %v830
        %v832 = vrot.slane %v831, 2
        %v833 = vadd.f32 %v831, %v832
        %v834 = vrot.slane %v833, 1
        %v835 = vadd.f32 %v833, %v834
        %837 = vrot.lane.b32.xlu0 %v835, 4
        %v838 = vpop.permute.xlu0 %837
        %v840 = vsel %vm708, %v721, %v838
        %vm841 = vcmask 57344
        %842 = vst.msk [vmem:[%s370] sm:$0x1] %vm841, %v840
        %v843 = vld [vmem:[%s6] sm:$0xff]
        %v844 = vld [vmem:[%s6 + $0x8] sm:$0xff]
        %v845 = vld [vmem:[%s6 + $0x10] sm:$0xff]
        %v846 = vld [vmem:[%s6 + $0x18] sm:$0xff]
        %v848 = vsel %vm605, %v582, 0
        %v851 = vsel %vm605, %v587, 0
        %v854 = vsel %vm605, %v592, 0
        %v857 = vsel %vm605, %v597, 0
        %859 = vmatprep.subr.mxu0 0.0
        %860 = vmatpush1.msra.mxu0 %v843
        %861 = vmatprep.subr.mxu0 0.0
        %862 = vmatpush1.msra.mxu0 %v844
        %863 = vmatprep.subr.mxu0 0.0
        %864 = vmatpush1.msra.mxu0 %v845
        %865 = vmatprep.subr.mxu0 0.0
        %866 = vmatpush1.msra.mxu0 %v846
        %867 = vmatprep.subr.mxu0 0.0
        %868 = vmatpush1.msra.mxu0 0.0
        %869 = vmatprep.subr.mxu0 0.0
        %870 = vmatpush1.msra.mxu0 0.0
        %871 = vmatprep.subr.mxu0 0.0
        %872 = vmatpush1.msra.mxu0 0.0
        %873 = vmatprep.subr.mxu0 0.0
        %874 = vmatpush1.msra.mxu0 0.0
        %875 = vmatprep.subr.mxu0 0.0
        %876 = vmatpush1.msra.mxu0 0.0
        %877 = vmatprep.subr.mxu0 0.0
        %878 = vmatpush1.msra.mxu0 0.0
        %879 = vmatprep.subr.mxu0 0.0
        %880 = vmatpush1.msra.mxu0 0.0
        %881 = vmatprep.subr.mxu0 0.0
        %882 = vmatpush1.msra.mxu0 0.0
        %883 = vmatprep.subr.mxu0 0.0
        %884 = vmatpush1.msra.mxu0 0.0
        %885 = vmatprep.subr.mxu0 0.0
        %886 = vmatpush1.msra.mxu0 0.0
        %887 = vmatprep.subr.mxu0 0.0
        %888 = vmatpush1.msra.mxu0 0.0
        %889 = vmatprep.subr.mxu0 0.0
        %890 = vmatpush1.msra.mxu0 0.0
        %891 = vmatprep.subr.mxu0 0.0
        %892 = vmatpush1.msra.mxu0 0.0
        %893 = vmatprep.subr.mxu0 0.0
        %894 = vmatpush1.msra.mxu0 0.0
        %895 = vmatprep.subr.mxu0 0.0
        %896 = vmatpush1.msra.mxu0 0.0
        %897 = vmatprep.subr.mxu0 0.0
        %898 = vmatpush1.msra.mxu0 0.0
        %899 = vmatprep.subr.mxu0 0.0
        %900 = vmatpush1.msra.mxu0 0.0
        %901 = vmatprep.subr.mxu0 0.0
        %902 = vmatpush1.msra.mxu0 0.0
        %903 = vmatprep.subr.mxu0 0.0
        %904 = vmatpush1.msra.mxu0 0.0
        %905 = vmatprep.subr.mxu0 0.0
        %906 = vmatpush1.msra.mxu0 0.0
        %907 = vmatprep.subr.mxu0 0.0
        %908 = vmatpush1.msra.mxu0 0.0
        %909 = vmatprep.subr.mxu0 0.0
        %910 = vmatpush1.msra.mxu0 0.0
        %911 = vmatprep.subr.mxu0 0.0
        %912 = vmatpush1.msra.mxu0 0.0
        %913 = vmatprep.subr.mxu0 0.0
        %914 = vmatpush1.msra.mxu0 0.0
        %915 = vmatprep.subr.mxu0 0.0
        %916 = vmatpush1.msra.mxu0 0.0
        %917 = vmatprep.subr.mxu0 0.0
        %918 = vmatpush1.msra.mxu0 0.0
        %919 = vmatprep.subr.mxu0 0.0
        %920 = vmatpush1.msra.mxu0 0.0
        %921 = vmatprep.subr.mxu0 0.0
        %922 = vmatpush1.msra.mxu0 0.0
        %923 = vmatprep.mubr.f32.mxu0 0.0
        %924 = vmatmul.mubr.f32.gmra.mrb[0].mxu0 %v848
        %v925 = vpop.f32.mrb[0].mxu0
        %v926 = vadd.f32 0.0, %v925
        %v927 = vpop.f32.mrb[0].mxu0
        %928 = vmatprep.mubr.f32.mxu0 0.0
        %929 = vmatmul.mubr.f32.gmra.mrb[0].mxu0 %v851
        %v930 = vpop.f32.mrb[0].mxu0
        %v931 = vadd.f32 0.0, %v930
        %v932 = vpop.f32.mrb[0].mxu0
        %933 = vmatprep.mubr.f32.mxu0 0.0
        %934 = vmatmul.mubr.f32.gmra.mrb[0].mxu0 %v854
        %v935 = vpop.f32.mrb[0].mxu0
        %v936 = vadd.f32 0.0, %v935
        %v937 = vpop.f32.mrb[0].mxu0
        %938 = vmatprep.mubr.f32.mxu0 0.0
        %939 = vmatmul.mubr.f32.gmra.mrb[0].mxu0 %v857
        %v940 = vpop.f32.mrb[0].mxu0
        %v941 = vadd.f32 0.0, %v940
        %v942 = vpop.f32.mrb[0].mxu0
        %943 = vdwg.mxu0
        %v944 = vsel %vm708, %v926, 0.0
        %v945 = vsel %vm708, %v931, 0.0
        %v946 = vadd.f32 %v944, %v945
        %v947 = vsel %vm708, %v936, 0.0
        %v948 = vadd.f32 %v946, %v947
        %v949 = vsel %vm708, %v941, 0.0
        %v950 = vadd.f32 %v948, %v949
        %v951 = vrot.slane %v950, 4
        %v952 = vadd.f32 %v950, %v951
        %v953 = vrot.slane %v952, 2
        %v954 = vadd.f32 %v952, %v953
        %v955 = vrot.slane %v954, 1
        %v956 = vadd.f32 %v954, %v955
        %v957 = vmul.f32 %v582, %v582
        %v958 = vmul.f32 %v587, %v587
        %v959 = vmul.f32 %v592, %v592
        %v960 = vmul.f32 %v597, %v597
        %v962 = vsel %vm605, %v957, 0
        %v965 = vsel %vm605, %v958, 0
        %v968 = vsel %vm605, %v959, 0
        %v971 = vsel %vm605, %v960, 0
        %973 = vmatprep.subr.mxu0 0.0
        %974 = vmatpush1.msra.mxu0 %v843
        %975 = vmatprep.subr.mxu0 0.0
        %976 = vmatpush1.msra.mxu0 %v844
        %977 = vmatprep.subr.mxu0 0.0
        %978 = vmatpush1.msra.mxu0 %v845
        %979 = vmatprep.subr.mxu0 0.0
        %980 = vmatpush1.msra.mxu0 %v846
        %981 = vmatprep.subr.mxu0 0.0
        %982 = vmatpush1.msra.mxu0 0.0
        %983 = vmatprep.subr.mxu0 0.0
        %984 = vmatpush1.msra.mxu0 0.0
        %985 = vmatprep.subr.mxu0 0.0
        %986 = vmatpush1.msra.mxu0 0.0
        %987 = vmatprep.subr.mxu0 0.0
        %988 = vmatpush1.msra.mxu0 0.0
        %989 = vmatprep.subr.mxu0 0.0
        %990 = vmatpush1.msra.mxu0 0.0
        %991 = vmatprep.subr.mxu0 0.0
        %992 = vmatpush1.msra.mxu0 0.0
        %993 = vmatprep.subr.mxu0 0.0
        %994 = vmatpush1.msra.mxu0 0.0
        %995 = vmatprep.subr.mxu0 0.0
        %996 = vmatpush1.msra.mxu0 0.0
        %997 = vmatprep.subr.mxu0 0.0
        %998 = vmatpush1.msra.mxu0 0.0
        %999 = vmatprep.subr.mxu0 0.0
        %1000 = vmatpush1.msra.mxu0 0.0
        %1001 = vmatprep.subr.mxu0 0.0
        %1002 = vmatpush1.msra.mxu0 0.0
        %1003 = vmatprep.subr.mxu0 0.0
        %1004 = vmatpush1.msra.mxu0 0.0
        %1005 = vmatprep.subr.mxu0 0.0
        %1006 = vmatpush1.msra.mxu0 0.0
        %1007 = vmatprep.subr.mxu0 0.0
        %1008 = vmatpush1.msra.mxu0 0.0
        %1009 = vmatprep.subr.mxu0 0.0
        %1010 = vmatpush1.msra.mxu0 0.0
        %1011 = vmatprep.subr.mxu0 0.0
        %1012 = vmatpush1.msra.mxu0 0.0
        %1013 = vmatprep.subr.mxu0 0.0
        %1014 = vmatpush1.msra.mxu0 0.0
        %1015 = vmatprep.subr.mxu0 0.0
        %1016 = vmatpush1.msra.mxu0 0.0
        %1017 = vmatprep.subr.mxu0 0.0
        %1018 = vmatpush1.msra.mxu0 0.0
        %1019 = vmatprep.subr.mxu0 0.0
        %1020 = vmatpush1.msra.mxu0 0.0
        %1021 = vmatprep.subr.mxu0 0.0
        %1022 = vmatpush1.msra.mxu0 0.0
        %1023 = vmatprep.subr.mxu0 0.0
        %1024 = vmatpush1.msra.mxu0 0.0
        %1025 = vmatprep.subr.mxu0 0.0
        %1026 = vmatpush1.msra.mxu0 0.0
        %1027 = vmatprep.subr.mxu0 0.0
        %1028 = vmatpush1.msra.mxu0 0.0
        %1029 = vmatprep.subr.mxu0 0.0
        %1030 = vmatpush1.msra.mxu0 0.0
        %1031 = vmatprep.subr.mxu0 0.0
        %1032 = vmatpush1.msra.mxu0 0.0
        %1033 = vmatprep.subr.mxu0 0.0
        %1034 = vmatpush1.msra.mxu0 0.0
        %1035 = vmatprep.subr.mxu0 0.0
        %1036 = vmatpush1.msra.mxu0 0.0
        %1037 = vmatprep.mubr.f32.mxu0 0.0
        %1038 = vmatmul.mubr.f32.gmra.mrb[0].mxu0 %v962
        %v1039 = vpop.f32.mrb[0].mxu0
        %v1040 = vadd.f32 0.0, %v1039
        %v1041 = vpop.f32.mrb[0].mxu0
        %1042 = vmatprep.mubr.f32.mxu0 0.0
        %1043 = vmatmul.mubr.f32.gmra.mrb[0].mxu0 %v965
        %v1044 = vpop.f32.mrb[0].mxu0
        %v1045 = vadd.f32 0.0, %v1044
        %v1046 = vpop.f32.mrb[0].mxu0
        %1047 = vmatprep.mubr.f32.mxu0 0.0
        %1048 = vmatmul.mubr.f32.gmra.mrb[0].mxu0 %v968
        %v1049 = vpop.f32.mrb[0].mxu0
        %v1050 = vadd.f32 0.0, %v1049
        %v1051 = vpop.f32.mrb[0].mxu0
        %1052 = vmatprep.mubr.f32.mxu0 0.0
        %1053 = vmatmul.mubr.f32.gmra.mrb[0].mxu0 %v971
        %v1054 = vpop.f32.mrb[0].mxu0
        %v1055 = vadd.f32 0.0, %v1054
        %v1056 = vpop.f32.mrb[0].mxu0
        %1057 = vdwg.mxu0
        %v1058 = vsel %vm708, %v1040, 0.0
        %v1059 = vsel %vm708, %v1045, 0.0
        %v1060 = vadd.f32 %v1058, %v1059
        %v1061 = vsel %vm708, %v1050, 0.0
        %v1062 = vadd.f32 %v1060, %v1061
        %v1063 = vsel %vm708, %v1055, 0.0
        %v1064 = vadd.f32 %v1062, %v1063
        %v1065 = vrot.slane %v1064, 4
        %v1066 = vadd.f32 %v1064, %v1065
        %v1067 = vrot.slane %v1066, 2
        %v1068 = vadd.f32 %v1066, %v1067
        %v1069 = vrot.slane %v1068, 1
        %v1070 = vadd.f32 %v1068, %v1069
        %1072 = vrot.lane.b32.xlu0 %v1070, 4
        %v1073 = vpop.permute.xlu0 %1072
        %v1075 = vsel %vm708, %v956, %v1073
        %1076 = vst.msk [vmem:[%s376] sm:$0x1] %vm841, %v1075
        %s1077 = smul.u32 4, %s28
        %p1078 = scmp.lt.s32.totalorder %s1077, 15
        %s1079 = scalar_select %p1078, %s1077, 15
        %s1080 = smul.addr %s1079, 8
        %s1081 = scalar_lea.vmem %s7, %s1080
        %s1082 = smul.u32 4, %s28
        %p1083 = scmp.lt.s32.totalorder %s1082, 15
        %s1084 = scalar_select %p1083, %s1082, 15
        %s1085 = smul.addr %s1084, 8
        %s1086 = scalar_lea.vmem %s8, %s1085
        %s1087 = sand.u32 %s240, 1
        %s1088 = scalar_lea.sflag [#allocation3], %s1087
        %s1089 = sand.u32 %s240, 1
        %s1090 = scalar_lea.vmem [#allocation2], %s1089
        %s1091 = sand.u32 %s266, 1
        %s1092 = scalar_lea.sflag [#allocation5], %s1091
        %s1093 = sand.u32 %s266, 1
        %s1094 = scalar_lea.vmem [#allocation4], %s1093
        // Predicated region
        $region49: #{tpu_custom_call.1} parent=47 // pred_check
          %p1095 = pneg %p198
        $region50: #{tpu_custom_call.1} parent=47 // pred_check_branch
          %1097 = sbr.rel (%p1095) target = $region52
        $region51: #{tpu_custom_call.1} parent=47 // pred_region
          %s1098 = smul.u32 4, %s28
        $region52: #{tpu_custom_call.1} parent=47 // pred_fallthru
          _
        // Predicated region
        $region53: #{tpu_custom_call.1} parent=47 // pred_check
          %p1099 = pneg %p224
        $region54: #{tpu_custom_call.1} parent=47 // pred_check_branch
          %1101 = sbr.rel (%p1099) target = $region56
        $region55: #{tpu_custom_call.1} parent=47 // pred_region
          %s1102 = smul.u32 4, %s28
        $region56: #{tpu_custom_call.1} parent=47 // pred_fallthru
          _
        // Predicated region
        $region57: #{tpu_custom_call.1} parent=47 // pred_check
          %p1103 = pneg %p250
        $region58: #{tpu_custom_call.1} parent=47 // pred_check_branch
          %1105 = sbr.rel (%p1103) target = $region60
        $region59: #{tpu_custom_call.1} parent=47 // pred_region
          %s1107 = ssub.s32 16, 16
          %1108 = vsyncadd %s1088, %s1107
          %s1109 = smul.addr %s28, 16
          %s1110 = scalar_lea.hbm %s9, %s1109
          %s1112 = sshll.u32 %s1090, 4
          %s1113 = int_to_ptr.vmem [resolvable:$true] %s1112
          %1115 = dma.vmem_to_hbm [thread:$0]  %s1113, 16, %s1110, %s1088
        $region60: #{tpu_custom_call.1} parent=47 // pred_fallthru
          _
        // Predicated region
        $region61: #{tpu_custom_call.1} parent=47 // pred_check
          %p1116 = pneg %p276
        $region62: #{tpu_custom_call.1} parent=47 // pred_check_branch
          %1118 = sbr.rel (%p1116) target = $region64
        $region63: #{tpu_custom_call.1} parent=47 // pred_region
          %s1120 = ssub.s32 16, 16
          %1121 = vsyncadd %s1092, %s1120
          %s1122 = smul.addr %s28, 16
          %s1123 = scalar_lea.hbm %s10, %s1122
          %s1125 = sshll.u32 %s1094, 4
          %s1126 = int_to_ptr.vmem [resolvable:$true] %s1125
          %1128 = dma.vmem_to_hbm [thread:$0]  %s1126, 16, %s1123, %s1092
        $region64: #{tpu_custom_call.1} parent=47 // pred_fallthru
          _
      $region48: #{tpu_custom_call.1} parent=5 // pred_fallthru
        _
      %p1129 = scmp.le.s32.totalorder 2, %s23
      // Predicated region
      $region65: #{tpu_custom_call.1} parent=5 // pred_check
        %p1130 = pneg %p1129
      $region66: #{tpu_custom_call.1} parent=5 // pred_check_branch
        %1132 = sbr.rel (%p1130) target = $region68
      $region67: #{tpu_custom_call.1} parent=5 // pred_region
        %s1133 = ssub.s32 %s23, 2
        // Predicated region
        $region69: #{tpu_custom_call.1} parent=67 // pred_check
          %p1134 = pneg %p204
        $region70: #{tpu_custom_call.1} parent=67 // pred_check_branch
          %1136 = sbr.rel (%p1134) target = $region72
        $region71: #{tpu_custom_call.1} parent=67 // pred_region
          %s1137 = smul.u32 4, %s29
          %p1138 = scmp.lt.s32.totalorder %s1137, 15
          %s1139 = scalar_select %p1138, %s1137, 15
          %s1140 = smul.addr %s1139, 8
          %s1141 = scalar_lea.vmem %s7, %s1140
        $region72: #{tpu_custom_call.1} parent=67 // pred_fallthru
          _
        // Predicated region
        $region73: #{tpu_custom_call.1} parent=67 // pred_check
          %p1142 = pneg %p230
        $region74: #{tpu_custom_call.1} parent=67 // pred_check_branch
          %1144 = sbr.rel (%p1142) target = $region76
        $region75: #{tpu_custom_call.1} parent=67 // pred_region
          %s1145 = smul.u32 4, %s29
          %p1146 = scmp.lt.s32.totalorder %s1145, 15
          %s1147 = scalar_select %p1146, %s1145, 15
          %s1148 = smul.addr %s1147, 8
          %s1149 = scalar_lea.vmem %s8, %s1148
        $region76: #{tpu_custom_call.1} parent=67 // pred_fallthru
          _
        // Predicated region
        $region77: #{tpu_custom_call.1} parent=67 // pred_check
          %p1150 = pneg %p256
        $region78: #{tpu_custom_call.1} parent=67 // pred_check_branch
          %1152 = sbr.rel (%p1150) target = $region80
        $region79: #{tpu_custom_call.1} parent=67 // pred_region
          %s1153 = sand.u32 %s241, 1
          %s1154 = scalar_lea.sflag [#allocation3], %s1153
          %s1155 = sand.u32 %s241, 1
          %s1156 = scalar_lea.vmem [#allocation2], %s1155
          %1157 = dma.done %s1154, 16
        $region80: #{tpu_custom_call.1} parent=67 // pred_fallthru
          _
        // Predicated region
        $region81: #{tpu_custom_call.1} parent=67 // pred_check
          %p1158 = pneg %p282
        $region82: #{tpu_custom_call.1} parent=67 // pred_check_branch
          %1160 = sbr.rel (%p1158) target = $region84
        $region83: #{tpu_custom_call.1} parent=67 // pred_region
          %s1161 = sand.u32 %s267, 1
          %s1162 = scalar_lea.sflag [#allocation5], %s1161
          %s1163 = sand.u32 %s267, 1
          %s1164 = scalar_lea.vmem [#allocation4], %s1163
          %1165 = dma.done %s1162, 16
        $region84: #{tpu_custom_call.1} parent=67 // pred_fallthru
          _
      $region68: #{tpu_custom_call.1} parent=5 // pred_fallthru
        _
    $region6: #{tpu_custom_call.1} parent=1 // loop_footer
      %s27 = sadd.s32 1, %s23
    $region7: #{tpu_custom_call.1} parent=1 // loop_footer_branch
      %22 = sbr.rel target = $region3
    $region8: #{tpu_custom_call.1} parent=1 // loop_exit
      _
    %1166 = vsyncpa [#allocation3], 1
    %s1167 = scalar_lea.sflag [#allocation3], 1
    %1168 = vsyncpa %s1167, 1
    %1169 = vsyncpa [#allocation5], 1
    %s1170 = scalar_lea.sflag [#allocation5], 1
    %1171 = vsyncpa %s1170, 1

</llo_original>
